<compile_context>
chip_gen: v6e
topology: v6e:2x2x1
jax: 0.10.0
libtpu: 0.0.40
codegen_flags: <defaults>
</compile_context>

<pallas_src>
import jax
import jax.numpy as jnp
from jax import lax
from jax.experimental import pallas as pl
from jax.experimental.pallas import tpu as pltpu

HIDDEN_PAD = 128  # padded hidden width (real hidden = 50)


def _mlp_kernel(x_ref, w1_ref, b1_ref, w2_ref, b2_ref, w3_ref, b3_ref, o_ref):
    # x tile arrives as f32 (single 4 B/elt HBM read); cast on the VPU.
    x = x_ref[...].astype(jnp.bfloat16)
    # fc1 + relu : (TB, nvar) bf16 @ (nvar, H) bf16 -> f32
    h = jnp.dot(x, w1_ref[...], preferred_element_type=jnp.float32)
    h = jnp.maximum(h + b1_ref[...], 0.0)
    # fc2 + relu : bf16 matmul inputs, f32 accumulation / elementwise
    h = jnp.dot(h.astype(jnp.bfloat16), w2_ref[...],
                preferred_element_type=jnp.float32)
    h = jnp.maximum(h + b2_ref[...], 0.0)
    # fc3 : bf16 MXU, contraction on the last dim of BOTH operands (no h.T
    # materialization).  w3_ref is (8, H) bf16 with the real weights in row 0
    # (rows 1..7 zero); result is (8, TB), keep row 0 -> lane-dense (1, TB).
    out8 = lax.dot_general(w3_ref[...], h.astype(jnp.bfloat16),
                           dimension_numbers=(((1,), (1,)), ((), ())),
                           preferred_element_type=jnp.float32)
    o_ref[...] = (out8[0:1, :] + b3_ref[0, 0]).astype(o_ref.dtype)


def init_params(key, nvar, hidden=50):
    """Deterministic init mimicking nn.Linear default (uniform +-1/sqrt(fan_in)).
    Weights stored as [in, out] (i.e. torch W.T), biases as [1, out]."""
    ks = jax.random.split(key, 6)

    def lin(kw, kb, fan_in, fan_out):
        bound = 1.0 / jnp.sqrt(fan_in)
        w = jax.random.uniform(kw, (fan_in, fan_out), jnp.float32, -bound, bound)
        b = jax.random.uniform(kb, (1, fan_out), jnp.float32, -bound, bound)
        return w, b

    w1, b1 = lin(ks[0], ks[1], nvar, hidden)
    w2, b2 = lin(ks[2], ks[3], hidden, hidden)
    w3, b3 = lin(ks[4], ks[5], hidden, 1)
    return (w1, b1, w2, b2, w3, b3)


def pack_params(params, hidden_pad=HIDDEN_PAD):
    """Zero-pad hidden 50->128, cast all matmul weights to bf16 (incl. w3,
    laid out as an (8, H) row block with row 0 real), b3 as a (1,1) SMEM scalar."""
    w1, b1, w2, b2, w3, b3 = params
    nvar, hidden = w1.shape
    H = hidden_pad
    w1p = jnp.zeros((nvar, H), jnp.bfloat16).at[:, :hidden].set(w1.astype(jnp.bfloat16))
    b1p = jnp.zeros((1, H), jnp.float32).at[:, :hidden].set(b1)
    w2p = jnp.zeros((H, H), jnp.bfloat16).at[:hidden, :hidden].set(w2.astype(jnp.bfloat16))
    b2p = jnp.zeros((1, H), jnp.float32).at[:, :hidden].set(b2)
    w3p = jnp.zeros((8, H), jnp.bfloat16).at[0, :hidden].set(w3[:, 0].astype(jnp.bfloat16))
    b3p = b3.reshape(1, 1).astype(jnp.float32)
    return (w1p, b1p, w2p, b2p, w3p, b3p)


def _pick_tb(b, *, tb_cap=4096, tb_align=256):
    """Largest tile (multiple of 256, <= tb_cap) that still yields >= 2 batch
    tiles when B is big enough, so v7x's two TensorCores both get work while
    per-step grid overhead stays amortized.  VMEM at tb_cap=4096 is ~14 MiB,
    under the 32 MiB limit requested below on every generation."""
    target = pl.cdiv(b, 2) if b >= 2 * tb_align else b
    tb = ((target + tb_align - 1) // tb_align) * tb_align
    return max(tb_align, min(tb, tb_cap))


def mlp_forward(x, packed, *, tb=None):
    """x: [B, nvar] float32; returns [B] float32 (matches torch x.squeeze() for
    B > 1; for B == 1 this returns shape (1,) instead of a 0-d scalar)."""
    w1, b1, w2, b2, w3, b3 = packed
    B, nvar = x.shape
    H = w1.shape[1]
    if tb is None:
        tb = _pick_tb(B)
    n_tiles = pl.cdiv(B, tb)
    b_pad = n_tiles * tb

    # Only pad the ragged tail; NO wrapper-side dtype cast (cast is in-kernel).
    if b_pad != B:
        x = jnp.pad(x, ((0, b_pad - B), (0, 0)))

    resident = lambda shape: pl.BlockSpec(shape, lambda i: (0, 0))

    out = pl.pallas_call(
        _mlp_kernel,
        out_shape=jax.ShapeDtypeStruct((1, b_pad), jnp.float32),
        grid=(n_tiles,),
        in_specs=[
            pl.BlockSpec((tb, nvar), lambda i: (i, 0)),        # x: f32 batch tiles
            resident((nvar, H)),                               # w1 (VMEM-resident)
            resident((1, H)),                                  # b1
            resident((H, H)),                                  # w2
            resident((1, H)),                                  # b2
            resident((8, H)),                                  # w3 (row 0 real, bf16)
            pl.BlockSpec(memory_space=pltpu.MemorySpace.SMEM), # b3 scalar
        ],
        out_specs=pl.BlockSpec((1, tb), lambda i: (0, i)),     # lane-dense out
        compiler_params=pltpu.CompilerParams(
            dimension_semantics=("parallel",),                 # v7x: 2 TCs
            vmem_limit_bytes=32 * 1024 * 1024),                # raises v5e's 16 MiB
    )(x, w1, b1, w2, b2, w3, b3)
    return out.reshape(b_pad)[:B]


if __name__ == "__main__":
    key = jax.random.PRNGKey(0)
    kx, kp = jax.random.split(key)

    batch, nvar = 1000, 16               # -> TB=512, 2 batch tiles (last padded)
    x = jax.random.normal(kx, (batch, nvar), jnp.float32)
    params = init_params(kp, nvar)
    packed = pack_params(params)

    y = mlp_forward(x, packed)
    jax.block_until_ready(y)
    assert y.shape == (batch,)

    # Reference 1: identical bf16/padded compute in plain jnp (tight check).
    w1p, b1p, w2p, b2p, w3p, b3p = packed
    xb = x.astype(jnp.bfloat16)
    h = jnp.maximum(jnp.dot(xb, w1p, preferred_element_type=jnp.float32) + b1p, 0.0)
    h = jnp.maximum(jnp.dot(h.astype(jnp.bfloat16), w2p,
                            preferred_element_type=jnp.float32) + b2p, 0.0)
    y_match = (jnp.dot(h.astype(jnp.bfloat16), w3p[0:1, :].T,
                       preferred_element_type=jnp.float32) + b3p).reshape(batch)
    assert jnp.allclose(y, y_match, atol=2e-3, rtol=2e-3)

    # Reference 2: original f32 module semantics (loose: bf16 matmul inputs).
    w1, b1, w2, b2, w3, b3 = params
    hf = jnp.maximum(x @ w1 + b1, 0.0)
    hf = jnp.maximum(hf @ w2 + b2, 0.0)
    y_f32 = (hf @ w3 + b3).reshape(batch)
    assert jnp.allclose(y, y_f32, atol=1e-1, rtol=1e-1)

    print("KERNEL_OK")
</pallas_src>

<mosaic_0001>
module attributes {stable_mosaic.version = 11 : i64} {
  func.func @_mlp_kernel(%arg0: i32, %arg1: memref<512x16xf32, #tpu.memory_space<vmem>>, %arg2: memref<16x128xbf16, #tpu.memory_space<vmem>>, %arg3: memref<1x128xf32, #tpu.memory_space<vmem>>, %arg4: memref<128x128xbf16, #tpu.memory_space<vmem>>, %arg5: memref<1x128xf32, #tpu.memory_space<vmem>>, %arg6: memref<8x128xbf16, #tpu.memory_space<vmem>>, %arg7: memref<1x1xf32, #tpu.memory_space<smem>>, %arg8: memref<1x512xf32, #tpu.memory_space<vmem>>) attributes {dimension_semantics = [#tpu.dimension_semantics<parallel>], iteration_bounds = array<i64: 2>, scalar_prefetch = 0 : i64, scratch_operands = 0 : i64, tpu.core_type = #tpu.core_type<tc>, window_params = [{transform_indices = @transform_0, window_bounds = array<i64: 512, 16>}, {pipeline_mode = #tpu.pipeline_mode<synchronous>, transform_indices = @transform_1, window_bounds = array<i64: 16, 128>}, {pipeline_mode = #tpu.pipeline_mode<synchronous>, transform_indices = @transform_2, window_bounds = array<i64: 1, 128>}, {pipeline_mode = #tpu.pipeline_mode<synchronous>, transform_indices = @transform_3, window_bounds = array<i64: 128, 128>}, {pipeline_mode = #tpu.pipeline_mode<synchronous>, transform_indices = @transform_4, window_bounds = array<i64: 1, 128>}, {pipeline_mode = #tpu.pipeline_mode<synchronous>, transform_indices = @transform_5, window_bounds = array<i64: 8, 128>}, {transform_indices = @transform_6, window_bounds = array<i64: 1, 1>}, {transform_indices = @transform_7, window_bounds = array<i64: 1, 512>}]} {
    %c0 = arith.constant 0 : index
    %c0_0 = arith.constant 0 : index
    %0 = vector.load %arg1[%c0, %c0_0] : memref<512x16xf32, #tpu.memory_space<vmem>>, vector<512x16xf32>
    %1 = arith.truncf %0 : vector<512x16xf32> to vector<512x16xbf16>
    %c0_1 = arith.constant 0 : index
    %c0_2 = arith.constant 0 : index
    %2 = vector.load %arg2[%c0_1, %c0_2] : memref<16x128xbf16, #tpu.memory_space<vmem>>, vector<16x128xbf16>
    %cst = arith.constant dense<0.000000e+00> : vector<512x128xf32>
    %3 = tpu.matmul %1, %2, %cst {dimension_numbers = #tpu.dot_dimension_numbers<[1], [0], [0], [1], [0, 0, 1, 1], [], []>} : vector<512x16xbf16>, vector<16x128xbf16>, vector<512x128xf32> -> vector<512x128xf32>
    %c0_3 = arith.constant 0 : index
    %c0_4 = arith.constant 0 : index
    %4 = vector.load %arg3[%c0_3, %c0_4] : memref<1x128xf32, #tpu.memory_space<vmem>>, vector<1x128xf32>
    %5 = vector.broadcast %4 : vector<1x128xf32> to vector<512x128xf32>
    %6 = arith.addf %3, %5 : vector<512x128xf32>
    %cst_5 = arith.constant 0.000000e+00 : f32
    %7 = vector.broadcast %cst_5 : f32 to vector<512x128xf32>
    %8 = arith.maximumf %6, %7 : vector<512x128xf32>
    %9 = arith.truncf %8 : vector<512x128xf32> to vector<512x128xbf16>
    %c0_6 = arith.constant 0 : index
    %c0_7 = arith.constant 0 : index
    %10 = vector.load %arg4[%c0_6, %c0_7] : memref<128x128xbf16, #tpu.memory_space<vmem>>, vector<128x128xbf16>
    %cst_8 = arith.constant dense<0.000000e+00> : vector<512x128xf32>
    %11 = tpu.matmul %9, %10, %cst_8 {dimension_numbers = #tpu.dot_dimension_numbers<[1], [0], [0], [1], [0, 0, 1, 1], [], []>} : vector<512x128xbf16>, vector<128x128xbf16>, vector<512x128xf32> -> vector<512x128xf32>
    %c0_9 = arith.constant 0 : index
    %c0_10 = arith.constant 0 : index
    %12 = vector.load %arg5[%c0_9, %c0_10] : memref<1x128xf32, #tpu.memory_space<vmem>>, vector<1x128xf32>
    %13 = vector.broadcast %12 : vector<1x128xf32> to vector<512x128xf32>
    %14 = arith.addf %11, %13 : vector<512x128xf32>
    %cst_11 = arith.constant 0.000000e+00 : f32
    %15 = vector.broadcast %cst_11 : f32 to vector<512x128xf32>
    %16 = arith.maximumf %14, %15 : vector<512x128xf32>
    %c0_12 = arith.constant 0 : index
    %c0_13 = arith.constant 0 : index
    %17 = vector.load %arg6[%c0_12, %c0_13] : memref<8x128xbf16, #tpu.memory_space<vmem>>, vector<8x128xbf16>
    %18 = arith.truncf %16 : vector<512x128xf32> to vector<512x128xbf16>
    %cst_14 = arith.constant dense<0.000000e+00> : vector<8x512xf32>
    %19 = tpu.matmul %17, %18, %cst_14 {dimension_numbers = #tpu.dot_dimension_numbers<[1], [1], [0], [0], [0, 0, 1, 0], [], []>} : vector<8x128xbf16>, vector<512x128xbf16>, vector<8x512xf32> -> vector<8x512xf32>
    %20 = vector.extract_strided_slice %19 {offsets = [0, 0], sizes = [1, 512], strides = [1, 1]} : vector<8x512xf32> to vector<1x512xf32>
    %c0_15 = arith.constant 0 : index
    %c0_16 = arith.constant 0 : index
    %21 = memref.load %arg7[%c0_15, %c0_16] : memref<1x1xf32, #tpu.memory_space<smem>>
    %22 = vector.broadcast %21 : f32 to vector<1x512xf32>
    %23 = arith.addf %20, %22 : vector<1x512xf32>
    %c0_17 = arith.constant 0 : index
    %c0_18 = arith.constant 0 : index
    %24 = vector.load %arg8[%c0_17, %c0_18] : memref<1x512xf32, #tpu.memory_space<vmem>>, vector<1x512xf32>
    tpu.vector_store %arg8[%c0_17, %c0_18], %23 {strides = array<i32>} : memref<1x512xf32, #tpu.memory_space<vmem>>, vector<1x512xf32>,
    return
  }
  func.func @transform_0(%arg0: i32) -> (i32, i32) {
    %c0_i32 = arith.constant 0 : i32
    %c0_i32_0 = arith.constant 0 : i32
    return %arg0, %c0_i32 : i32, i32
  }
  func.func @transform_1(%arg0: i32) -> (i32, i32) {
    %c0_i32 = arith.constant 0 : i32
    %c0_i32_0 = arith.constant 0 : i32
    %c0_i32_1 = arith.constant 0 : i32
    return %c0_i32, %c0_i32_0 : i32, i32
  }
  func.func @transform_2(%arg0: i32) -> (i32, i32) {
    %c0_i32 = arith.constant 0 : i32
    %c0_i32_0 = arith.constant 0 : i32
    %c0_i32_1 = arith.constant 0 : i32
    return %c0_i32, %c0_i32_0 : i32, i32
  }
  func.func @transform_3(%arg0: i32) -> (i32, i32) {
    %c0_i32 = arith.constant 0 : i32
    %c0_i32_0 = arith.constant 0 : i32
    %c0_i32_1 = arith.constant 0 : i32
    return %c0_i32, %c0_i32_0 : i32, i32
  }
  func.func @transform_4(%arg0: i32) -> (i32, i32) {
    %c0_i32 = arith.constant 0 : i32
    %c0_i32_0 = arith.constant 0 : i32
    %c0_i32_1 = arith.constant 0 : i32
    return %c0_i32, %c0_i32_0 : i32, i32
  }
  func.func @transform_5(%arg0: i32) -> (i32, i32) {
    %c0_i32 = arith.constant 0 : i32
    %c0_i32_0 = arith.constant 0 : i32
    %c0_i32_1 = arith.constant 0 : i32
    return %c0_i32, %c0_i32_0 : i32, i32
  }
  func.func @transform_6(%arg0: i32) -> (i32, i32) {
    %c0_i32 = arith.constant 0 : i32
    %c0_i32_0 = arith.constant 0 : i32
    %c0_i32_1 = arith.constant 0 : i32
    return %c0_i32, %c0_i32_0 : i32, i32
  }
  func.func @transform_7(%arg0: i32) -> (i32, i32) {
    %c0_i32 = arith.constant 0 : i32
    %c0_i32_0 = arith.constant 0 : i32
    return %c0_i32, %arg0 : i32, i32
  }
}

</mosaic_0001>

<llo_original>
// kernel: tpu_custom_call.1
$region0: #{tpu_custom_call.1}
  #allocation0 [shape = 'u32[]', space=smem, size = 0x4, offset = 0x4, fixed_abs, tag = 'smem constant byte address 0x4 - core index']
  #allocation1 [shape = 'u32[144,128]{1,0:T(1,128)}', space=vmem, size = 0x12000, scoped, tag = 'internal scratch']
  #allocation2 [shape = 'f32[1,1]{1,0:T(1,128)S(6)}', space=smem, size = 0x200, scoped, tag = 'scoped memory for tpu_custom_call.1']
  %s0 = inlined_call_operand.vmem [shape: f32[1024,16], index: 0, kind: input, shape index: {}]
  %s1 = inlined_call_operand.vmem [shape: bf16[16,128], index: 1, kind: input, shape index: {}]
  %s2 = inlined_call_operand.vmem [shape: f32[1,128], index: 2, kind: input, shape index: {}]
  %s3 = inlined_call_operand.vmem [shape: bf16[128,128], index: 3, kind: input, shape index: {}]
  %s4 = inlined_call_operand.vmem [shape: f32[1,128], index: 4, kind: input, shape index: {}]
  %s5 = inlined_call_operand.vmem [shape: bf16[8,128], index: 5, kind: input, shape index: {}]
  %s6 = inlined_call_operand.<no memory space> [shape: f32[1,1], index: 6, kind: input, shape index: {}]
  %s7 = inlined_call_operand.hbm [shape: f32[1,1024], index: 7, kind: output, shape index: {}]
  %s8 = sld [smem:[#allocation0]]
  $region61: #{tpu_custom_call.1} parent=0
    _
  %s10 = ssub.s32 1, %s8
  %s11 = scalar_select 0, %s10, %s8
  %12 = sst [smem:[#allocation2]] %s6
  $region1: #{tpu_custom_call.1} parent=0
    #allocation3 [shape = 'u8[4096]{0}', space=vmem, size = 0x1000, scoped, tag = 'output window, operand 0']
    #allocation4 [shape = 's32[2]{0}', space=sflag, size = 0x8, scoped, tag = 'scoped memory for tpu_custom_call.1']
    %13 = vsyncpa [#allocation4], 0
    %s14 = scalar_lea.sflag [#allocation4], 1
    %15 = vsyncpa %s14, 0
    loop: start=0, step=1, limit=4
    $region2: #{tpu_custom_call.1} parent=1 // loop_pre_header
      _
    $region3: #{tpu_custom_call.1} parent=1 // loop_header
      %s17 = sphi 0, %s21
      %p18 = scmp.ge.s32.totalorder %s17, 4
      %s27 = sphi 0, %s29
      %s30 = sphi 0, %s27
      %s31 = sphi 0, %s30
      %s47 = sphi 0, %s31
      %s51 = sphi 0, %s51
      %s53 = sphi 0, %s51
      %s54 = sphi 0, %s53
      %s68 = sphi 0, %s54
      %s72 = sphi 0, %s72
      %s74 = sphi 0, %s72
      %s75 = sphi 0, %s74
      %s89 = sphi 0, %s75
      %s93 = sphi 0, %s93
      %s95 = sphi 0, %s93
      %s96 = sphi 0, %s95
      %s110 = sphi 0, %s96
      %s114 = sphi 0, %s114
      %s116 = sphi 0, %s114
      %s117 = sphi 0, %s116
      %s131 = sphi 0, %s117
      %s135 = sphi 0, %s135
      %s137 = sphi 0, %s135
      %s138 = sphi 0, %s137
      %s152 = sphi 0, %s138
      %s156 = sphi 0, %s156
      %s158 = sphi 0, %s156
      %s159 = sphi 0, %s158
      %s173 = sphi 0, %s159
      %s179 = sphi 0, %s181
      %s182 = sphi 0, %s179
      %s183 = sphi 0, %s182
      %s199 = sphi 0, %s183
    $region4: #{tpu_custom_call.1} parent=1 // loop_header_branch
      %20 = sbr.rel (%p18) target = $region8
    $region5: #{tpu_custom_call.1} parent=1 // loop_body
      %s22 = ssub.s32 %s17, 1
      %s23 = ssub.s32 %s17, 2
      %s24 = sadd.s32 %s17, 1
      %s25 = ssub.s32 %s17, %s24
      %p26 = scmp.eq.s32.totalorder %s25, 0
      %s28 = sadd.s32 %s27, 1
      %s29 = scalar_select %p26, %s27, %s28
      %p32 = pneg %p26
      %p33 = scmp.eq.s32.totalorder %s17, 1
      %p34 = por %p32, %p33
      %p35 = scmp.ne.s32.totalorder %s27, %s30
      %p36 = scmp.eq.s32.totalorder %s17, 0
      %p37 = por %p35, %p36
      %p38 = scmp.ne.s32.totalorder %s27, %s30
      %p39 = scmp.eq.s32.totalorder %s22, 1
      %p40 = por %p38, %p39
      %p41 = scmp.ne.s32.totalorder %s30, %s31
      %p42 = scmp.eq.s32.totalorder %s22, 0
      %p43 = por %p41, %p42
      %p44 = scmp.ne.s32.totalorder %s30, %s31
      %p45 = scmp.eq.s32.totalorder %s23, 1
      %p46 = por %p44, %p45
      %p48 = scmp.ne.s32.totalorder %s31, %s47
      %p49 = scmp.eq.s32.totalorder %s23, 0
      %p50 = por %p48, %p49
      %s52 = sadd.s32 %s51, 1
      %p55 = scmp.eq.s32.totalorder %s17, 1
      %p56 = scmp.ne.s32.totalorder %s51, %s53
      %p57 = scmp.eq.s32.totalorder %s17, 0
      %p58 = por %p56, %p57
      %p59 = scmp.ne.s32.totalorder %s51, %s53
      %p60 = scmp.eq.s32.totalorder %s22, 1
      %p61 = por %p59, %p60
      %p62 = scmp.ne.s32.totalorder %s53, %s54
      %p63 = scmp.eq.s32.totalorder %s22, 0
      %p64 = por %p62, %p63
      %p65 = scmp.ne.s32.totalorder %s53, %s54
      %p66 = scmp.eq.s32.totalorder %s23, 1
      %p67 = por %p65, %p66
      %p69 = scmp.ne.s32.totalorder %s54, %s68
      %p70 = scmp.eq.s32.totalorder %s23, 0
      %p71 = por %p69, %p70
      %s73 = sadd.s32 %s72, 1
      %p76 = scmp.eq.s32.totalorder %s17, 1
      %p77 = scmp.ne.s32.totalorder %s72, %s74
      %p78 = scmp.eq.s32.totalorder %s17, 0
      %p79 = por %p77, %p78
      %p80 = scmp.ne.s32.totalorder %s72, %s74
      %p81 = scmp.eq.s32.totalorder %s22, 1
      %p82 = por %p80, %p81
      %p83 = scmp.ne.s32.totalorder %s74, %s75
      %p84 = scmp.eq.s32.totalorder %s22, 0
      %p85 = por %p83, %p84
      %p86 = scmp.ne.s32.totalorder %s74, %s75
      %p87 = scmp.eq.s32.totalorder %s23, 1
      %p88 = por %p86, %p87
      %p90 = scmp.ne.s32.totalorder %s75, %s89
      %p91 = scmp.eq.s32.totalorder %s23, 0
      %p92 = por %p90, %p91
      %s94 = sadd.s32 %s93, 1
      %p97 = scmp.eq.s32.totalorder %s17, 1
      %p98 = scmp.ne.s32.totalorder %s93, %s95
      %p99 = scmp.eq.s32.totalorder %s17, 0
      %p100 = por %p98, %p99
      %p101 = scmp.ne.s32.totalorder %s93, %s95
      %p102 = scmp.eq.s32.totalorder %s22, 1
      %p103 = por %p101, %p102
      %p104 = scmp.ne.s32.totalorder %s95, %s96
      %p105 = scmp.eq.s32.totalorder %s22, 0
      %p106 = por %p104, %p105
      %p107 = scmp.ne.s32.totalorder %s95, %s96
      %p108 = scmp.eq.s32.totalorder %s23, 1
      %p109 = por %p107, %p108
      %p111 = scmp.ne.s32.totalorder %s96, %s110
      %p112 = scmp.eq.s32.totalorder %s23, 0
      %p113 = por %p111, %p112
      %s115 = sadd.s32 %s114, 1
      %p118 = scmp.eq.s32.totalorder %s17, 1
      %p119 = scmp.ne.s32.totalorder %s114, %s116
      %p120 = scmp.eq.s32.totalorder %s17, 0
      %p121 = por %p119, %p120
      %p122 = scmp.ne.s32.totalorder %s114, %s116
      %p123 = scmp.eq.s32.totalorder %s22, 1
      %p124 = por %p122, %p123
      %p125 = scmp.ne.s32.totalorder %s116, %s117
      %p126 = scmp.eq.s32.totalorder %s22, 0
      %p127 = por %p125, %p126
      %p128 = scmp.ne.s32.totalorder %s116, %s117
      %p129 = scmp.eq.s32.totalorder %s23, 1
      %p130 = por %p128, %p129
      %p132 = scmp.ne.s32.totalorder %s117, %s131
      %p133 = scmp.eq.s32.totalorder %s23, 0
      %p134 = por %p132, %p133
      %s136 = sadd.s32 %s135, 1
      %p139 = scmp.eq.s32.totalorder %s17, 1
      %p140 = scmp.ne.s32.totalorder %s135, %s137
      %p141 = scmp.eq.s32.totalorder %s17, 0
      %p142 = por %p140, %p141
      %p143 = scmp.ne.s32.totalorder %s135, %s137
      %p144 = scmp.eq.s32.totalorder %s22, 1
      %p145 = por %p143, %p144
      %p146 = scmp.ne.s32.totalorder %s137, %s138
      %p147 = scmp.eq.s32.totalorder %s22, 0
      %p148 = por %p146, %p147
      %p149 = scmp.ne.s32.totalorder %s137, %s138
      %p150 = scmp.eq.s32.totalorder %s23, 1
      %p151 = por %p149, %p150
      %p153 = scmp.ne.s32.totalorder %s138, %s152
      %p154 = scmp.eq.s32.totalorder %s23, 0
      %p155 = por %p153, %p154
      %s157 = sadd.s32 %s156, 1
      %p160 = scmp.eq.s32.totalorder %s17, 1
      %p161 = scmp.ne.s32.totalorder %s156, %s158
      %p162 = scmp.eq.s32.totalorder %s17, 0
      %p163 = por %p161, %p162
      %p164 = scmp.ne.s32.totalorder %s156, %s158
      %p165 = scmp.eq.s32.totalorder %s22, 1
      %p166 = por %p164, %p165
      %p167 = scmp.ne.s32.totalorder %s158, %s159
      %p168 = scmp.eq.s32.totalorder %s22, 0
      %p169 = por %p167, %p168
      %p170 = scmp.ne.s32.totalorder %s158, %s159
      %p171 = scmp.eq.s32.totalorder %s23, 1
      %p172 = por %p170, %p171
      %p174 = scmp.ne.s32.totalorder %s159, %s173
      %p175 = scmp.eq.s32.totalorder %s23, 0
      %p176 = por %p174, %p175
      %s177 = ssub.s32 %s17, %s24
      %p178 = scmp.eq.s32.totalorder %s177, 0
      %s180 = sadd.s32 %s179, 1
      %s181 = scalar_select %p178, %s179, %s180
      %p184 = pneg %p178
      %p185 = scmp.eq.s32.totalorder %s17, 1
      %p186 = por %p184, %p185
      %p187 = scmp.ne.s32.totalorder %s179, %s182
      %p188 = scmp.eq.s32.totalorder %s17, 0
      %p189 = por %p187, %p188
      %p190 = scmp.ne.s32.totalorder %s179, %s182
      %p191 = scmp.eq.s32.totalorder %s22, 1
      %p192 = por %p190, %p191
      %p193 = scmp.ne.s32.totalorder %s182, %s183
      %p194 = scmp.eq.s32.totalorder %s22, 0
      %p195 = por %p193, %p194
      %p196 = scmp.ne.s32.totalorder %s182, %s183
      %p197 = scmp.eq.s32.totalorder %s23, 1
      %p198 = por %p196, %p197
      %p200 = scmp.ne.s32.totalorder %s183, %s199
      %p201 = scmp.eq.s32.totalorder %s23, 0
      %p202 = por %p200, %p201
      %p203 = scmp.le.s32.totalorder 1, %s17
      %p204 = scmp.lt.s32.totalorder %s17, 3
      %p205 = pnand %p203, %p204
      %p206 = pneg %p205
      // Predicated region
      $region9: #{tpu_custom_call.1} parent=5 // pred_check
        _
      $region10: #{tpu_custom_call.1} parent=5 // pred_check_branch
        %208 = sbr.rel (%p205) target = $region12
      $region11: #{tpu_custom_call.1} parent=5 // pred_region
        %s209 = ssub.s32 %s17, 1
        // Predicated region
        $region13: #{tpu_custom_call.1} parent=11 // pred_check
          %p210 = pneg %p64
        $region14: #{tpu_custom_call.1} parent=11 // pred_check_branch
          %212 = sbr.rel (%p210) target = $region16
        $region15: #{tpu_custom_call.1} parent=11 // pred_region
          _
        $region16: #{tpu_custom_call.1} parent=11 // pred_fallthru
          _
        // Predicated region
        $region17: #{tpu_custom_call.1} parent=11 // pred_check
          %p213 = pneg %p85
        $region18: #{tpu_custom_call.1} parent=11 // pred_check_branch
          %215 = sbr.rel (%p213) target = $region20
        $region19: #{tpu_custom_call.1} parent=11 // pred_region
          _
        $region20: #{tpu_custom_call.1} parent=11 // pred_fallthru
          _
        // Predicated region
        $region21: #{tpu_custom_call.1} parent=11 // pred_check
          %p216 = pneg %p106
        $region22: #{tpu_custom_call.1} parent=11 // pred_check_branch
          %218 = sbr.rel (%p216) target = $region24
        $region23: #{tpu_custom_call.1} parent=11 // pred_region
          _
        $region24: #{tpu_custom_call.1} parent=11 // pred_fallthru
          _
        // Predicated region
        $region25: #{tpu_custom_call.1} parent=11 // pred_check
          %p219 = pneg %p127
        $region26: #{tpu_custom_call.1} parent=11 // pred_check_branch
          %221 = sbr.rel (%p219) target = $region28
        $region27: #{tpu_custom_call.1} parent=11 // pred_region
          _
        $region28: #{tpu_custom_call.1} parent=11 // pred_fallthru
          _
        // Predicated region
        $region29: #{tpu_custom_call.1} parent=11 // pred_check
          %p222 = pneg %p148
        $region30: #{tpu_custom_call.1} parent=11 // pred_check_branch
          %224 = sbr.rel (%p222) target = $region32
        $region31: #{tpu_custom_call.1} parent=11 // pred_region
          _
        $region32: #{tpu_custom_call.1} parent=11 // pred_fallthru
          _
        // Predicated region
        $region33: #{tpu_custom_call.1} parent=11 // pred_check
          %p225 = pneg %p169
        $region34: #{tpu_custom_call.1} parent=11 // pred_check_branch
          %227 = sbr.rel (%p225) target = $region36
        $region35: #{tpu_custom_call.1} parent=11 // pred_region
          _
        $region36: #{tpu_custom_call.1} parent=11 // pred_fallthru
          _
      $region12: #{tpu_custom_call.1} parent=5 // pred_fallthru
        _
      %p228 = scmp.lt.s32.totalorder %s17, 2
      // Predicated region
      $region37: #{tpu_custom_call.1} parent=5 // pred_check
        %p229 = pneg %p228
      $region38: #{tpu_custom_call.1} parent=5 // pred_check_branch
        %231 = sbr.rel (%p229) target = $region40
      $region39: #{tpu_custom_call.1} parent=5 // pred_region
        // Predicated region
        $region41: #{tpu_custom_call.1} parent=39 // pred_check
          %p232 = pneg %p37
        $region42: #{tpu_custom_call.1} parent=39 // pred_check_branch
          %234 = sbr.rel (%p232) target = $region44
        $region43: #{tpu_custom_call.1} parent=39 // pred_region
          %s235 = smul.u32 64, %s17
          %p236 = scmp.lt.s32.totalorder %s235, 127
          %s237 = scalar_select %p236, %s235, 127
          %s238 = smul.addr %s237, 8
          %s239 = scalar_lea.vmem %s0, %s238
          %s240 = smul.u32 64, %s17
        $region44: #{tpu_custom_call.1} parent=39 // pred_fallthru
          _
      $region40: #{tpu_custom_call.1} parent=5 // pred_fallthru
        _
      %p241 = scmp.le.s32.totalorder 1, %s17
      %p242 = scmp.lt.s32.totalorder %s17, 3
      %p243 = pnand %p241, %p242
      %p244 = pneg %p243
      // Predicated region
      $region45: #{tpu_custom_call.1} parent=5 // pred_check
        _
      $region46: #{tpu_custom_call.1} parent=5 // pred_check_branch
        %246 = sbr.rel (%p243) target = $region48
      $region47: #{tpu_custom_call.1} parent=5 // pred_region
        %s247 = ssub.s32 %s17, 1
        %s248 = smul.u32 64, %s22
        %p249 = scmp.lt.s32.totalorder %s248, 127
        %s250 = scalar_select %p249, %s248, 127
        %s251 = smul.addr %s250, 8
        %s252 = scalar_lea.vmem %s0, %s251
        %p253 = pneg %p43
        %p254 = pneg %p40
        %p255 = pneg %p64
        %p256 = pneg %p61
        %p257 = pneg %p85
        %p258 = pneg %p82
        %p259 = pneg %p106
        %p260 = pneg %p103
        %p261 = pneg %p127
        %p262 = pneg %p124
        %p263 = pneg %p148
        %p264 = pneg %p145
        %p265 = pneg %p169
        %p266 = pneg %p166
        %p267 = pneg %p195
        %p268 = pneg %p192
        %s269 = sand.u32 %s182, 1
        %s270 = scalar_lea.sflag [#allocation4], %s269
        %s271 = sand.u32 %s182, 1
        %s272 = smul.addr %s271, 4
        %s273 = scalar_lea.vmem [#allocation3], %s272
        %s274 = smul.u32 64, %s22
        %p275 = scmp.lt.s32.totalorder %s274, 127
        %s276 = scalar_select %p275, %s274, 127
        %s277 = smul.addr %s276, 8
        %s278 = scalar_lea.vmem %s0, %s277
        %s279 = smul.u32 64, %s22
        %s280 = smul.u32 4, %s22
        %v282 = vld [vmem:[%s278] sm:$0xff]
        %v283 = vld [vmem:[%s278 + $0x8] sm:$0xff]
        %v284 = vld [vmem:[%s278 + $0x10] sm:$0xff]
        %v285 = vld [vmem:[%s278 + $0x18] sm:$0xff]
        %v286 = vld [vmem:[%s278 + $0x20] sm:$0xff]
        %v287 = vld [vmem:[%s278 + $0x28] sm:$0xff]
        %v288 = vld [vmem:[%s278 + $0x30] sm:$0xff]
        %v289 = vld [vmem:[%s278 + $0x38] sm:$0xff]
        %v290 = vld [vmem:[%s278 + $0x40] sm:$0xff]
        %v291 = vld [vmem:[%s278 + $0x48] sm:$0xff]
        %v292 = vld [vmem:[%s278 + $0x50] sm:$0xff]
        %v293 = vld [vmem:[%s278 + $0x58] sm:$0xff]
        %v294 = vld [vmem:[%s278 + $0x60] sm:$0xff]
        %v295 = vld [vmem:[%s278 + $0x68] sm:$0xff]
        %v296 = vld [vmem:[%s278 + $0x70] sm:$0xff]
        %v297 = vld [vmem:[%s278 + $0x78] sm:$0xff]
        %v298 = vld [vmem:[%s278 + $0x80] sm:$0xff]
        %v299 = vld [vmem:[%s278 + $0x88] sm:$0xff]
        %v300 = vld [vmem:[%s278 + $0x90] sm:$0xff]
        %v301 = vld [vmem:[%s278 + $0x98] sm:$0xff]
        %v302 = vld [vmem:[%s278 + $0xa0] sm:$0xff]
        %v303 = vld [vmem:[%s278 + $0xa8] sm:$0xff]
        %v304 = vld [vmem:[%s278 + $0xb0] sm:$0xff]
        %v305 = vld [vmem:[%s278 + $0xb8] sm:$0xff]
        %v306 = vld [vmem:[%s278 + $0xc0] sm:$0xff]
        %v307 = vld [vmem:[%s278 + $0xc8] sm:$0xff]
        %v308 = vld [vmem:[%s278 + $0xd0] sm:$0xff]
        %v309 = vld [vmem:[%s278 + $0xd8] sm:$0xff]
        %v310 = vld [vmem:[%s278 + $0xe0] sm:$0xff]
        %v311 = vld [vmem:[%s278 + $0xe8] sm:$0xff]
        %v312 = vld [vmem:[%s278 + $0xf0] sm:$0xff]
        %v313 = vld [vmem:[%s278 + $0xf8] sm:$0xff]
        %v314 = vld [vmem:[%s278 + $0x100] sm:$0xff]
        %v315 = vld [vmem:[%s278 + $0x108] sm:$0xff]
        %v316 = vld [vmem:[%s278 + $0x110] sm:$0xff]
        %v317 = vld [vmem:[%s278 + $0x118] sm:$0xff]
        %v318 = vld [vmem:[%s278 + $0x120] sm:$0xff]
        %v319 = vld [vmem:[%s278 + $0x128] sm:$0xff]
        %v320 = vld [vmem:[%s278 + $0x130] sm:$0xff]
        %v321 = vld [vmem:[%s278 + $0x138] sm:$0xff]
        %v322 = vld [vmem:[%s278 + $0x140] sm:$0xff]
        %v323 = vld [vmem:[%s278 + $0x148] sm:$0xff]
        %v324 = vld [vmem:[%s278 + $0x150] sm:$0xff]
        %v325 = vld [vmem:[%s278 + $0x158] sm:$0xff]
        %v326 = vld [vmem:[%s278 + $0x160] sm:$0xff]
        %v327 = vld [vmem:[%s278 + $0x168] sm:$0xff]
        %v328 = vld [vmem:[%s278 + $0x170] sm:$0xff]
        %v329 = vld [vmem:[%s278 + $0x178] sm:$0xff]
        %v330 = vld [vmem:[%s278 + $0x180] sm:$0xff]
        %v331 = vld [vmem:[%s278 + $0x188] sm:$0xff]
        %v332 = vld [vmem:[%s278 + $0x190] sm:$0xff]
        %v333 = vld [vmem:[%s278 + $0x198] sm:$0xff]
        %v334 = vld [vmem:[%s278 + $0x1a0] sm:$0xff]
        %v335 = vld [vmem:[%s278 + $0x1a8] sm:$0xff]
        %v336 = vld [vmem:[%s278 + $0x1b0] sm:$0xff]
        %v337 = vld [vmem:[%s278 + $0x1b8] sm:$0xff]
        %v338 = vld [vmem:[%s278 + $0x1c0] sm:$0xff]
        %v339 = vld [vmem:[%s278 + $0x1c8] sm:$0xff]
        %v340 = vld [vmem:[%s278 + $0x1d0] sm:$0xff]
        %v341 = vld [vmem:[%s278 + $0x1d8] sm:$0xff]
        %v342 = vld [vmem:[%s278 + $0x1e0] sm:$0xff]
        %v343 = vld [vmem:[%s278 + $0x1e8] sm:$0xff]
        %v344 = vld [vmem:[%s278 + $0x1f0] sm:$0xff]
        %v345 = vld [vmem:[%s278 + $0x1f8] sm:$0xff]
        %v346 = vpack.c.bf16 %v283, %v282
        %v347 = vpack.c.bf16 %v285, %v284
        %v348 = vpack.c.bf16 %v287, %v286
        %v349 = vpack.c.bf16 %v289, %v288
        %v350 = vpack.c.bf16 %v291, %v290
        %v351 = vpack.c.bf16 %v293, %v292
        %v352 = vpack.c.bf16 %v295, %v294
        %v353 = vpack.c.bf16 %v297, %v296
        %v354 = vpack.c.bf16 %v299, %v298
        %v355 = vpack.c.bf16 %v301, %v300
        %v356 = vpack.c.bf16 %v303, %v302
        %v357 = vpack.c.bf16 %v305, %v304
        %v358 = vpack.c.bf16 %v307, %v306
        %v359 = vpack.c.bf16 %v309, %v308
        %v360 = vpack.c.bf16 %v311, %v310
        %v361 = vpack.c.bf16 %v313, %v312
        %v362 = vpack.c.bf16 %v315, %v314
        %v363 = vpack.c.bf16 %v317, %v316
        %v364 = vpack.c.bf16 %v319, %v318
        %v365 = vpack.c.bf16 %v321, %v320
        %v366 = vpack.c.bf16 %v323, %v322
        %v367 = vpack.c.bf16 %v325, %v324
        %v368 = vpack.c.bf16 %v327, %v326
        %v369 = vpack.c.bf16 %v329, %v328
        %v370 = vpack.c.bf16 %v331, %v330
        %v371 = vpack.c.bf16 %v333, %v332
        %v372 = vpack.c.bf16 %v335, %v334
        %v373 = vpack.c.bf16 %v337, %v336
        %v374 = vpack.c.bf16 %v339, %v338
        %v375 = vpack.c.bf16 %v341, %v340
        %v376 = vpack.c.bf16 %v343, %v342
        %v377 = vpack.c.bf16 %v345, %v344
        %v378 = vld [vmem:[%s1] sm:$0xf]
        %v379 = vld [vmem:[%s1 + $0x4] sm:$0xf]
        %v380 = vld [vmem:[%s2] sm:$0x1]
        %v382 = vlaneseq
        %v383 = vshrl.u32 %v382, 7
        %v384 = vsub.s32 0, %v383
        %v385 = vrot.slane %v380, %v384
        %v389 = vunpack.c.l.b16 %v378
        %v390 = vunpack.c.l.b16 %v379
        %v391 = vpack.c.b16 %v390, %v389
        %vm393 = vcmask 130048
        %v395 = vsel %vm393, %v346, 0
        %v398 = vsel %vm393, %v347, 0
        %v401 = vsel %vm393, %v348, 0
        %v404 = vsel %vm393, %v349, 0
        %v407 = vsel %vm393, %v350, 0
        %v410 = vsel %vm393, %v351, 0
        %v413 = vsel %vm393, %v352, 0
        %v416 = vsel %vm393, %v353, 0
        %v419 = vsel %vm393, %v354, 0
        %v422 = vsel %vm393, %v355, 0
        %v425 = vsel %vm393, %v356, 0
        %v428 = vsel %vm393, %v357, 0
        %v431 = vsel %vm393, %v358, 0
        %v434 = vsel %vm393, %v359, 0
        %v437 = vsel %vm393, %v360, 0
        %v440 = vsel %vm393, %v361, 0
        %v443 = vsel %vm393, %v362, 0
        %v446 = vsel %vm393, %v363, 0
        %v449 = vsel %vm393, %v364, 0
        %v452 = vsel %vm393, %v365, 0
        %v455 = vsel %vm393, %v366, 0
        %v458 = vsel %vm393, %v367, 0
        %v461 = vsel %vm393, %v368, 0
        %v464 = vsel %vm393, %v369, 0
        %v467 = vsel %vm393, %v370, 0
        %v470 = vsel %vm393, %v371, 0
        %v473 = vsel %vm393, %v372, 0
        %v476 = vsel %vm393, %v373, 0
        %v479 = vsel %vm393, %v374, 0
        %v482 = vsel %vm393, %v375, 0
        %v485 = vsel %vm393, %v376, 0
        %v488 = vsel %vm393, %v377, 0
        %490 = vmatprep.subr.bf16.mxu0 0
        %491 = vmatpush1.bf16.msra.mxu0 0
        %492 = vmatprep.subr.bf16.mxu0 0
        %493 = vmatpush1.bf16.msra.mxu0 0
        %494 = vmatprep.subr.bf16.mxu0 0
        %495 = vmatpush1.bf16.msra.mxu0 0
        %496 = vmatprep.subr.bf16.mxu0 0
        %497 = vmatpush1.bf16.msra.mxu0 0
        %498 = vmatprep.subr.bf16.mxu0 0
        %499 = vmatpush1.bf16.msra.mxu0 0
        %500 = vmatprep.subr.bf16.mxu0 0
        %501 = vmatpush1.bf16.msra.mxu0 0
        %502 = vmatprep.subr.bf16.mxu0 0
        %503 = vmatpush1.bf16.msra.mxu0 0
        %504 = vmatprep.subr.bf16.mxu0 0
        %505 = vmatpush1.bf16.msra.mxu0 %v391
        %506 = vmatprep.subr.bf16.mxu0 0
        %507 = vmatpush2.bf16.msra.mxu0 0
        %508 = vmatprep.subr.bf16.mxu0 0
        %509 = vmatpush2.bf16.msra.mxu0 0
        %510 = vmatprep.subr.bf16.mxu0 0
        %511 = vmatpush2.bf16.msra.mxu0 0
        %512 = vmatprep.subr.bf16.mxu0 0
        %513 = vmatpush2.bf16.msra.mxu0 0
        %514 = vmatprep.subr.bf16.mxu0 0
        %515 = vmatpush2.bf16.msra.mxu0 0
        %516 = vmatprep.subr.bf16.mxu0 0
        %517 = vmatpush2.bf16.msra.mxu0 0
        %518 = vmatprep.subr.bf16.mxu0 0
        %519 = vmatpush2.bf16.msra.mxu0 0
        %520 = vmatprep.subr.bf16.mxu0 0
        %521 = vmatpush2.bf16.msra.mxu0 0
        %522 = vmatprep.mubr.bf16.mxu0 0
        %523 = vmatmul.mubr.bf16.gmra.mxu0 %v395
        %v524 = vpop.f32.mrf.mxu0
        %v525 = vadd.f32 %v385, %v524
        %v526 = vpop.f32.mrf.mxu0
        %v527 = vpop.f32.mrf.mxu0
        %v528 = vadd.f32 %v385, %v527
        %v529 = vpop.f32.mrf.mxu0
        %530 = vmatprep.mubr.bf16.mxu0 0
        %531 = vmatmul.mubr.bf16.gmra.mxu0 %v398
        %v532 = vpop.f32.mrf.mxu0
        %v533 = vadd.f32 %v385, %v532
        %v534 = vpop.f32.mrf.mxu0
        %v535 = vpop.f32.mrf.mxu0
        %v536 = vadd.f32 %v385, %v535
        %v537 = vpop.f32.mrf.mxu0
        %538 = vmatprep.mubr.bf16.mxu0 0
        %539 = vmatmul.mubr.bf16.gmra.mxu0 %v401
        %v540 = vpop.f32.mrf.mxu0
        %v541 = vadd.f32 %v385, %v540
        %v542 = vpop.f32.mrf.mxu0
        %v543 = vpop.f32.mrf.mxu0
        %v544 = vadd.f32 %v385, %v543
        %v545 = vpop.f32.mrf.mxu0
        %546 = vmatprep.mubr.bf16.mxu0 0
        %547 = vmatmul.mubr.bf16.gmra.mxu0 %v404
        %v548 = vpop.f32.mrf.mxu0
        %v549 = vadd.f32 %v385, %v548
        %v550 = vpop.f32.mrf.mxu0
        %v551 = vpop.f32.mrf.mxu0
        %v552 = vadd.f32 %v385, %v551
        %v553 = vpop.f32.mrf.mxu0
        %554 = vmatprep.mubr.bf16.mxu0 0
        %555 = vmatmul.mubr.bf16.gmra.mxu0 %v407
        %v556 = vpop.f32.mrf.mxu0
        %v557 = vadd.f32 %v385, %v556
        %v558 = vpop.f32.mrf.mxu0
        %v559 = vpop.f32.mrf.mxu0
        %v560 = vadd.f32 %v385, %v559
        %v561 = vpop.f32.mrf.mxu0
        %562 = vmatprep.mubr.bf16.mxu0 0
        %563 = vmatmul.mubr.bf16.gmra.mxu0 %v410
        %v564 = vpop.f32.mrf.mxu0
        %v565 = vadd.f32 %v385, %v564
        %v566 = vpop.f32.mrf.mxu0
        %v567 = vpop.f32.mrf.mxu0
        %v568 = vadd.f32 %v385, %v567
        %v569 = vpop.f32.mrf.mxu0
        %570 = vmatprep.mubr.bf16.mxu0 0
        %571 = vmatmul.mubr.bf16.gmra.mxu0 %v413
        %v572 = vpop.f32.mrf.mxu0
        %v573 = vadd.f32 %v385, %v572
        %v574 = vpop.f32.mrf.mxu0
        %v575 = vpop.f32.mrf.mxu0
        %v576 = vadd.f32 %v385, %v575
        %v577 = vpop.f32.mrf.mxu0
        %578 = vmatprep.mubr.bf16.mxu0 0
        %579 = vmatmul.mubr.bf16.gmra.mxu0 %v416
        %v580 = vpop.f32.mrf.mxu0
        %v581 = vadd.f32 %v385, %v580
        %v582 = vpop.f32.mrf.mxu0
        %v583 = vpop.f32.mrf.mxu0
        %v584 = vadd.f32 %v385, %v583
        %v585 = vpop.f32.mrf.mxu0
        %586 = vmatprep.mubr.bf16.mxu0 0
        %587 = vmatmul.mubr.bf16.gmra.mxu0 %v419
        %v588 = vpop.f32.mrf.mxu0
        %v589 = vadd.f32 %v385, %v588
        %v590 = vpop.f32.mrf.mxu0
        %v591 = vpop.f32.mrf.mxu0
        %v592 = vadd.f32 %v385, %v591
        %v593 = vpop.f32.mrf.mxu0
        %594 = vmatprep.mubr.bf16.mxu0 0
        %595 = vmatmul.mubr.bf16.gmra.mxu0 %v422
        %v596 = vpop.f32.mrf.mxu0
        %v597 = vadd.f32 %v385, %v596
        %v598 = vpop.f32.mrf.mxu0
        %v599 = vpop.f32.mrf.mxu0
        %v600 = vadd.f32 %v385, %v599
        %v601 = vpop.f32.mrf.mxu0
        %602 = vmatprep.mubr.bf16.mxu0 0
        %603 = vmatmul.mubr.bf16.gmra.mxu0 %v425
        %v604 = vpop.f32.mrf.mxu0
        %v605 = vadd.f32 %v385, %v604
        %v606 = vpop.f32.mrf.mxu0
        %v607 = vpop.f32.mrf.mxu0
        %v608 = vadd.f32 %v385, %v607
        %v609 = vpop.f32.mrf.mxu0
        %610 = vmatprep.mubr.bf16.mxu0 0
        %611 = vmatmul.mubr.bf16.gmra.mxu0 %v428
        %v612 = vpop.f32.mrf.mxu0
        %v613 = vadd.f32 %v385, %v612
        %v614 = vpop.f32.mrf.mxu0
        %v615 = vpop.f32.mrf.mxu0
        %v616 = vadd.f32 %v385, %v615
        %v617 = vpop.f32.mrf.mxu0
        %618 = vmatprep.mubr.bf16.mxu0 0
        %619 = vmatmul.mubr.bf16.gmra.mxu0 %v431
        %v620 = vpop.f32.mrf.mxu0
        %v621 = vadd.f32 %v385, %v620
        %v622 = vpop.f32.mrf.mxu0
        %v623 = vpop.f32.mrf.mxu0
        %v624 = vadd.f32 %v385, %v623
        %v625 = vpop.f32.mrf.mxu0
        %626 = vmatprep.mubr.bf16.mxu0 0
        %627 = vmatmul.mubr.bf16.gmra.mxu0 %v434
        %v628 = vpop.f32.mrf.mxu0
        %v629 = vadd.f32 %v385, %v628
        %v630 = vpop.f32.mrf.mxu0
        %v631 = vpop.f32.mrf.mxu0
        %v632 = vadd.f32 %v385, %v631
        %v633 = vpop.f32.mrf.mxu0
        %634 = vmatprep.mubr.bf16.mxu0 0
        %635 = vmatmul.mubr.bf16.gmra.mxu0 %v437
        %v636 = vpop.f32.mrf.mxu0
        %v637 = vadd.f32 %v385, %v636
        %v638 = vpop.f32.mrf.mxu0
        %v639 = vpop.f32.mrf.mxu0
        %v640 = vadd.f32 %v385, %v639
        %v641 = vpop.f32.mrf.mxu0
        %642 = vmatprep.mubr.bf16.mxu0 0
        %643 = vmatmul.mubr.bf16.gmra.mxu0 %v440
        %v644 = vpop.f32.mrf.mxu0
        %v645 = vadd.f32 %v385, %v644
        %v646 = vpop.f32.mrf.mxu0
        %v647 = vpop.f32.mrf.mxu0
        %v648 = vadd.f32 %v385, %v647
        %v649 = vpop.f32.mrf.mxu0
        %650 = vmatprep.mubr.bf16.mxu0 0
        %651 = vmatmul.mubr.bf16.gmra.mxu0 %v443
        %v652 = vpop.f32.mrf.mxu0
        %v653 = vadd.f32 %v385, %v652
        %v654 = vpop.f32.mrf.mxu0
        %v655 = vpop.f32.mrf.mxu0
        %v656 = vadd.f32 %v385, %v655
        %v657 = vpop.f32.mrf.mxu0
        %658 = vmatprep.mubr.bf16.mxu0 0
        %659 = vmatmul.mubr.bf16.gmra.mxu0 %v446
        %v660 = vpop.f32.mrf.mxu0
        %v661 = vadd.f32 %v385, %v660
        %v662 = vpop.f32.mrf.mxu0
        %v663 = vpop.f32.mrf.mxu0
        %v664 = vadd.f32 %v385, %v663
        %v665 = vpop.f32.mrf.mxu0
        %666 = vmatprep.mubr.bf16.mxu0 0
        %667 = vmatmul.mubr.bf16.gmra.mxu0 %v449
        %v668 = vpop.f32.mrf.mxu0
        %v669 = vadd.f32 %v385, %v668
        %v670 = vpop.f32.mrf.mxu0
        %v671 = vpop.f32.mrf.mxu0
        %v672 = vadd.f32 %v385, %v671
        %v673 = vpop.f32.mrf.mxu0
        %674 = vmatprep.mubr.bf16.mxu0 0
        %675 = vmatmul.mubr.bf16.gmra.mxu0 %v452
        %v676 = vpop.f32.mrf.mxu0
        %v677 = vadd.f32 %v385, %v676
        %v678 = vpop.f32.mrf.mxu0
        %v679 = vpop.f32.mrf.mxu0
        %v680 = vadd.f32 %v385, %v679
        %v681 = vpop.f32.mrf.mxu0
        %682 = vmatprep.mubr.bf16.mxu0 0
        %683 = vmatmul.mubr.bf16.gmra.mxu0 %v455
        %v684 = vpop.f32.mrf.mxu0
        %v685 = vadd.f32 %v385, %v684
        %v686 = vpop.f32.mrf.mxu0
        %v687 = vpop.f32.mrf.mxu0
        %v688 = vadd.f32 %v385, %v687
        %v689 = vpop.f32.mrf.mxu0
        %690 = vmatprep.mubr.bf16.mxu0 0
        %691 = vmatmul.mubr.bf16.gmra.mxu0 %v458
        %v692 = vpop.f32.mrf.mxu0
        %v693 = vadd.f32 %v385, %v692
        %v694 = vpop.f32.mrf.mxu0
        %v695 = vpop.f32.mrf.mxu0
        %v696 = vadd.f32 %v385, %v695
        %v697 = vpop.f32.mrf.mxu0
        %698 = vmatprep.mubr.bf16.mxu0 0
        %699 = vmatmul.mubr.bf16.gmra.mxu0 %v461
        %v700 = vpop.f32.mrf.mxu0
        %v701 = vadd.f32 %v385, %v700
        %v702 = vpop.f32.mrf.mxu0
        %v703 = vpop.f32.mrf.mxu0
        %v704 = vadd.f32 %v385, %v703
        %v705 = vpop.f32.mrf.mxu0
        %706 = vmatprep.mubr.bf16.mxu0 0
        %707 = vmatmul.mubr.bf16.gmra.mxu0 %v464
        %v708 = vpop.f32.mrf.mxu0
        %v709 = vadd.f32 %v385, %v708
        %v710 = vpop.f32.mrf.mxu0
        %v711 = vpop.f32.mrf.mxu0
        %v712 = vadd.f32 %v385, %v711
        %v713 = vpop.f32.mrf.mxu0
        %714 = vmatprep.mubr.bf16.mxu0 0
        %715 = vmatmul.mubr.bf16.gmra.mxu0 %v467
        %v716 = vpop.f32.mrf.mxu0
        %v717 = vadd.f32 %v385, %v716
        %v718 = vpop.f32.mrf.mxu0
        %v719 = vpop.f32.mrf.mxu0
        %v720 = vadd.f32 %v385, %v719
        %v721 = vpop.f32.mrf.mxu0
        %722 = vmatprep.mubr.bf16.mxu0 0
        %723 = vmatmul.mubr.bf16.gmra.mxu0 %v470
        %v724 = vpop.f32.mrf.mxu0
        %v725 = vadd.f32 %v385, %v724
        %v726 = vpop.f32.mrf.mxu0
        %v727 = vpop.f32.mrf.mxu0
        %v728 = vadd.f32 %v385, %v727
        %v729 = vpop.f32.mrf.mxu0
        %730 = vmatprep.mubr.bf16.mxu0 0
        %731 = vmatmul.mubr.bf16.gmra.mxu0 %v473
        %v732 = vpop.f32.mrf.mxu0
        %v733 = vadd.f32 %v385, %v732
        %v734 = vpop.f32.mrf.mxu0
        %v735 = vpop.f32.mrf.mxu0
        %v736 = vadd.f32 %v385, %v735
        %v737 = vpop.f32.mrf.mxu0
        %738 = vmatprep.mubr.bf16.mxu0 0
        %739 = vmatmul.mubr.bf16.gmra.mxu0 %v476
        %v740 = vpop.f32.mrf.mxu0
        %v741 = vadd.f32 %v385, %v740
        %v742 = vpop.f32.mrf.mxu0
        %v743 = vpop.f32.mrf.mxu0
        %v744 = vadd.f32 %v385, %v743
        %v745 = vpop.f32.mrf.mxu0
        %746 = vmatprep.mubr.bf16.mxu0 0
        %747 = vmatmul.mubr.bf16.gmra.mxu0 %v479
        %v748 = vpop.f32.mrf.mxu0
        %v749 = vadd.f32 %v385, %v748
        %v750 = vpop.f32.mrf.mxu0
        %v751 = vpop.f32.mrf.mxu0
        %v752 = vadd.f32 %v385, %v751
        %v753 = vpop.f32.mrf.mxu0
        %754 = vmatprep.mubr.bf16.mxu0 0
        %755 = vmatmul.mubr.bf16.gmra.mxu0 %v482
        %v756 = vpop.f32.mrf.mxu0
        %v757 = vadd.f32 %v385, %v756
        %v758 = vpop.f32.mrf.mxu0
        %v759 = vpop.f32.mrf.mxu0
        %v760 = vadd.f32 %v385, %v759
        %v761 = vpop.f32.mrf.mxu0
        %762 = vmatprep.mubr.bf16.mxu0 0
        %763 = vmatmul.mubr.bf16.gmra.mxu0 %v485
        %v764 = vpop.f32.mrf.mxu0
        %v765 = vadd.f32 %v385, %v764
        %v766 = vpop.f32.mrf.mxu0
        %v767 = vpop.f32.mrf.mxu0
        %v768 = vadd.f32 %v385, %v767
        %v769 = vpop.f32.mrf.mxu0
        %770 = vmatprep.mubr.bf16.mxu0 0
        %771 = vmatmul.mubr.bf16.gmra.mxu0 %v488
        %v772 = vpop.f32.mrf.mxu0
        %v773 = vadd.f32 %v385, %v772
        %v774 = vpop.f32.mrf.mxu0
        %v775 = vpop.f32.mrf.mxu0
        %v776 = vadd.f32 %v385, %v775
        %v777 = vpop.f32.mrf.mxu0
        %778 = vdwg.mxu0
        %v779 = vmax.f32 %v525, 0.0
        %v780 = vmax.f32 %v528, 0.0
        %v781 = vmax.f32 %v533, 0.0
        %v782 = vmax.f32 %v536, 0.0
        %v783 = vmax.f32 %v541, 0.0
        %v784 = vmax.f32 %v544, 0.0
        %v785 = vmax.f32 %v549, 0.0
        %v786 = vmax.f32 %v552, 0.0
        %v787 = vmax.f32 %v557, 0.0
        %v788 = vmax.f32 %v560, 0.0
        %v789 = vmax.f32 %v565, 0.0
        %v790 = vmax.f32 %v568, 0.0
        %v791 = vmax.f32 %v573, 0.0
        %v792 = vmax.f32 %v576, 0.0
        %v793 = vmax.f32 %v581, 0.0
        %v794 = vmax.f32 %v584, 0.0
        %v795 = vmax.f32 %v589, 0.0
        %v796 = vmax.f32 %v592, 0.0
        %v797 = vmax.f32 %v597, 0.0
        %v798 = vmax.f32 %v600, 0.0
        %v799 = vmax.f32 %v605, 0.0
        %v800 = vmax.f32 %v608, 0.0
        %v801 = vmax.f32 %v613, 0.0
        %v802 = vmax.f32 %v616, 0.0
        %v803 = vmax.f32 %v621, 0.0
        %v804 = vmax.f32 %v624, 0.0
        %v805 = vmax.f32 %v629, 0.0
        %v806 = vmax.f32 %v632, 0.0
        %v807 = vmax.f32 %v637, 0.0
        %v808 = vmax.f32 %v640, 0.0
        %v809 = vmax.f32 %v645, 0.0
        %v810 = vmax.f32 %v648, 0.0
        %v811 = vmax.f32 %v653, 0.0
        %v812 = vmax.f32 %v656, 0.0
        %v813 = vmax.f32 %v661, 0.0
        %v814 = vmax.f32 %v664, 0.0
        %v815 = vmax.f32 %v669, 0.0
        %v816 = vmax.f32 %v672, 0.0
        %v817 = vmax.f32 %v677, 0.0
        %v818 = vmax.f32 %v680, 0.0
        %v819 = vmax.f32 %v685, 0.0
        %v820 = vmax.f32 %v688, 0.0
        %v821 = vmax.f32 %v693, 0.0
        %v822 = vmax.f32 %v696, 0.0
        %v823 = vmax.f32 %v701, 0.0
        %v824 = vmax.f32 %v704, 0.0
        %v825 = vmax.f32 %v709, 0.0
        %v826 = vmax.f32 %v712, 0.0
        %v827 = vmax.f32 %v717, 0.0
        %v828 = vmax.f32 %v720, 0.0
        %v829 = vmax.f32 %v725, 0.0
        %v830 = vmax.f32 %v728, 0.0
        %v831 = vmax.f32 %v733, 0.0
        %v832 = vmax.f32 %v736, 0.0
        %v833 = vmax.f32 %v741, 0.0
        %v834 = vmax.f32 %v744, 0.0
        %v835 = vmax.f32 %v749, 0.0
        %v836 = vmax.f32 %v752, 0.0
        %v837 = vmax.f32 %v757, 0.0
        %v838 = vmax.f32 %v760, 0.0
        %v839 = vmax.f32 %v765, 0.0
        %v840 = vmax.f32 %v768, 0.0
        %v841 = vmax.f32 %v773, 0.0
        %v842 = vmax.f32 %v776, 0.0
        %v843 = vpack.c.bf16 %v780, %v779
        %v844 = vpack.c.bf16 %v782, %v781
        %v845 = vpack.c.bf16 %v784, %v783
        %v846 = vpack.c.bf16 %v786, %v785
        %v847 = vpack.c.bf16 %v788, %v787
        %v848 = vpack.c.bf16 %v790, %v789
        %v849 = vpack.c.bf16 %v792, %v791
        %v850 = vpack.c.bf16 %v794, %v793
        %v851 = vpack.c.bf16 %v796, %v795
        %v852 = vpack.c.bf16 %v798, %v797
        %v853 = vpack.c.bf16 %v800, %v799
        %v854 = vpack.c.bf16 %v802, %v801
        %v855 = vpack.c.bf16 %v804, %v803
        %v856 = vpack.c.bf16 %v806, %v805
        %v857 = vpack.c.bf16 %v808, %v807
        %v858 = vpack.c.bf16 %v810, %v809
        %v859 = vpack.c.bf16 %v812, %v811
        %v860 = vpack.c.bf16 %v814, %v813
        %v861 = vpack.c.bf16 %v816, %v815
        %v862 = vpack.c.bf16 %v818, %v817
        %v863 = vpack.c.bf16 %v820, %v819
        %v864 = vpack.c.bf16 %v822, %v821
        %v865 = vpack.c.bf16 %v824, %v823
        %v866 = vpack.c.bf16 %v826, %v825
        %v867 = vpack.c.bf16 %v828, %v827
        %v868 = vpack.c.bf16 %v830, %v829
        %v869 = vpack.c.bf16 %v832, %v831
        %v870 = vpack.c.bf16 %v834, %v833
        %v871 = vpack.c.bf16 %v836, %v835
        %v872 = vpack.c.bf16 %v838, %v837
        %v873 = vpack.c.bf16 %v840, %v839
        %v874 = vpack.c.bf16 %v842, %v841
        %v875 = vld [vmem:[%s3] sm:$0xf]
        %v876 = vld [vmem:[%s3 + $0x4] sm:$0xf]
        %v877 = vld [vmem:[%s3 + $0x8] sm:$0xf]
        %v878 = vld [vmem:[%s3 + $0xc] sm:$0xf]
        %v879 = vld [vmem:[%s3 + $0x10] sm:$0xf]
        %v880 = vld [vmem:[%s3 + $0x14] sm:$0xf]
        %v881 = vld [vmem:[%s3 + $0x18] sm:$0xf]
        %v882 = vld [vmem:[%s3 + $0x1c] sm:$0xf]
        %v883 = vld [vmem:[%s3 + $0x20] sm:$0xf]
        %v884 = vld [vmem:[%s3 + $0x24] sm:$0xf]
        %v885 = vld [vmem:[%s3 + $0x28] sm:$0xf]
        %v886 = vld [vmem:[%s3 + $0x2c] sm:$0xf]
        %v887 = vld [vmem:[%s3 + $0x30] sm:$0xf]
        %v888 = vld [vmem:[%s3 + $0x34] sm:$0xf]
        %v889 = vld [vmem:[%s3 + $0x38] sm:$0xf]
        %v890 = vld [vmem:[%s3 + $0x3c] sm:$0xf]
        %v891 = vld [vmem:[%s4] sm:$0x1]
        %v893 = vlaneseq
        %v894 = vshrl.u32 %v893, 7
        %v895 = vsub.s32 0, %v894
        %v896 = vrot.slane %v891, %v895
        %v914 = vunpack.c.l.b16 %v875
        %v915 = vunpack.c.l.b16 %v876
        %v916 = vunpack.c.l.b16 %v877
        %v917 = vunpack.c.l.b16 %v878
        %v918 = vunpack.c.l.b16 %v879
        %v919 = vunpack.c.l.b16 %v880
        %v920 = vunpack.c.l.b16 %v881
        %v921 = vunpack.c.l.b16 %v882
        %v922 = vunpack.c.l.b16 %v883
        %v923 = vunpack.c.l.b16 %v884
        %v924 = vunpack.c.l.b16 %v885
        %v925 = vunpack.c.l.b16 %v886
        %v926 = vunpack.c.l.b16 %v887
        %v927 = vunpack.c.l.b16 %v888
        %v928 = vunpack.c.l.b16 %v889
        %v929 = vunpack.c.l.b16 %v890
        %v930 = vpack.c.b16 %v915, %v914
        %v931 = vpack.c.b16 %v917, %v916
        %v932 = vpack.c.b16 %v919, %v918
        %v933 = vpack.c.b16 %v921, %v920
        %v934 = vpack.c.b16 %v923, %v922
        %v935 = vpack.c.b16 %v925, %v924
        %v936 = vpack.c.b16 %v927, %v926
        %v937 = vpack.c.b16 %v929, %v928
        %946 = vmatprep.subr.bf16.mxu0 0
        %947 = vmatpush1.bf16.msra.mxu0 %v937
        %948 = vmatprep.subr.bf16.mxu0 0
        %949 = vmatpush1.bf16.msra.mxu0 %v936
        %950 = vmatprep.subr.bf16.mxu0 0
        %951 = vmatpush1.bf16.msra.mxu0 %v935
        %952 = vmatprep.subr.bf16.mxu0 0
        %953 = vmatpush1.bf16.msra.mxu0 %v934
        %954 = vmatprep.subr.bf16.mxu0 0
        %955 = vmatpush1.bf16.msra.mxu0 %v933
        %956 = vmatprep.subr.bf16.mxu0 0
        %957 = vmatpush1.bf16.msra.mxu0 %v932
        %958 = vmatprep.subr.bf16.mxu0 0
        %959 = vmatpush1.bf16.msra.mxu0 %v931
        %960 = vmatprep.subr.bf16.mxu0 0
        %961 = vmatpush1.bf16.msra.mxu0 %v930
        %962 = vmatprep.subr.bf16.mxu0 0
        %963 = vmatpush2.bf16.msra.mxu0 0
        %964 = vmatprep.subr.bf16.mxu0 0
        %965 = vmatpush2.bf16.msra.mxu0 0
        %966 = vmatprep.subr.bf16.mxu0 0
        %967 = vmatpush2.bf16.msra.mxu0 0
        %968 = vmatprep.subr.bf16.mxu0 0
        %969 = vmatpush2.bf16.msra.mxu0 0
        %970 = vmatprep.subr.bf16.mxu0 0
        %971 = vmatpush2.bf16.msra.mxu0 0
        %972 = vmatprep.subr.bf16.mxu0 0
        %973 = vmatpush2.bf16.msra.mxu0 0
        %974 = vmatprep.subr.bf16.mxu0 0
        %975 = vmatpush2.bf16.msra.mxu0 0
        %976 = vmatprep.subr.bf16.mxu0 0
        %977 = vmatpush2.bf16.msra.mxu0 0
        %978 = vmatprep.mubr.bf16.mxu0 0
        %979 = vmatmul.mubr.bf16.gmra.mxu0 %v843
        %v980 = vpop.f32.mrf.mxu0
        %v981 = vadd.f32 %v896, %v980
        %v982 = vpop.f32.mrf.mxu0
        %v983 = vpop.f32.mrf.mxu0
        %v984 = vadd.f32 %v896, %v983
        %v985 = vpop.f32.mrf.mxu0
        %986 = vmatprep.mubr.bf16.mxu0 0
        %987 = vmatmul.mubr.bf16.gmra.mxu0 %v844
        %v988 = vpop.f32.mrf.mxu0
        %v989 = vadd.f32 %v896, %v988
        %v990 = vpop.f32.mrf.mxu0
        %v991 = vpop.f32.mrf.mxu0
        %v992 = vadd.f32 %v896, %v991
        %v993 = vpop.f32.mrf.mxu0
        %994 = vmatprep.mubr.bf16.mxu0 0
        %995 = vmatmul.mubr.bf16.gmra.mxu0 %v845
        %v996 = vpop.f32.mrf.mxu0
        %v997 = vadd.f32 %v896, %v996
        %v998 = vpop.f32.mrf.mxu0
        %v999 = vpop.f32.mrf.mxu0
        %v1000 = vadd.f32 %v896, %v999
        %v1001 = vpop.f32.mrf.mxu0
        %1002 = vmatprep.mubr.bf16.mxu0 0
        %1003 = vmatmul.mubr.bf16.gmra.mxu0 %v846
        %v1004 = vpop.f32.mrf.mxu0
        %v1005 = vadd.f32 %v896, %v1004
        %v1006 = vpop.f32.mrf.mxu0
        %v1007 = vpop.f32.mrf.mxu0
        %v1008 = vadd.f32 %v896, %v1007
        %v1009 = vpop.f32.mrf.mxu0
        %1010 = vmatprep.mubr.bf16.mxu0 0
        %1011 = vmatmul.mubr.bf16.gmra.mxu0 %v847
        %v1012 = vpop.f32.mrf.mxu0
        %v1013 = vadd.f32 %v896, %v1012
        %v1014 = vpop.f32.mrf.mxu0
        %v1015 = vpop.f32.mrf.mxu0
        %v1016 = vadd.f32 %v896, %v1015
        %v1017 = vpop.f32.mrf.mxu0
        %1018 = vmatprep.mubr.bf16.mxu0 0
        %1019 = vmatmul.mubr.bf16.gmra.mxu0 %v848
        %v1020 = vpop.f32.mrf.mxu0
        %v1021 = vadd.f32 %v896, %v1020
        %v1022 = vpop.f32.mrf.mxu0
        %v1023 = vpop.f32.mrf.mxu0
        %v1024 = vadd.f32 %v896, %v1023
        %v1025 = vpop.f32.mrf.mxu0
        %1026 = vmatprep.mubr.bf16.mxu0 0
        %1027 = vmatmul.mubr.bf16.gmra.mxu0 %v849
        %v1028 = vpop.f32.mrf.mxu0
        %v1029 = vadd.f32 %v896, %v1028
        %v1030 = vpop.f32.mrf.mxu0
        %v1031 = vpop.f32.mrf.mxu0
        %v1032 = vadd.f32 %v896, %v1031
        %v1033 = vpop.f32.mrf.mxu0
        %1034 = vmatprep.mubr.bf16.mxu0 0
        %1035 = vmatmul.mubr.bf16.gmra.mxu0 %v850
        %v1036 = vpop.f32.mrf.mxu0
        %v1037 = vadd.f32 %v896, %v1036
        %v1038 = vpop.f32.mrf.mxu0
        %v1039 = vpop.f32.mrf.mxu0
        %v1040 = vadd.f32 %v896, %v1039
        %v1041 = vpop.f32.mrf.mxu0
        %1042 = vmatprep.mubr.bf16.mxu0 0
        %1043 = vmatmul.mubr.bf16.gmra.mxu0 %v851
        %v1044 = vpop.f32.mrf.mxu0
        %v1045 = vadd.f32 %v896, %v1044
        %v1046 = vpop.f32.mrf.mxu0
        %v1047 = vpop.f32.mrf.mxu0
        %v1048 = vadd.f32 %v896, %v1047
        %v1049 = vpop.f32.mrf.mxu0
        %1050 = vmatprep.mubr.bf16.mxu0 0
        %1051 = vmatmul.mubr.bf16.gmra.mxu0 %v852
        %v1052 = vpop.f32.mrf.mxu0
        %v1053 = vadd.f32 %v896, %v1052
        %v1054 = vpop.f32.mrf.mxu0
        %v1055 = vpop.f32.mrf.mxu0
        %v1056 = vadd.f32 %v896, %v1055
        %v1057 = vpop.f32.mrf.mxu0
        %1058 = vmatprep.mubr.bf16.mxu0 0
        %1059 = vmatmul.mubr.bf16.gmra.mxu0 %v853
        %v1060 = vpop.f32.mrf.mxu0
        %v1061 = vadd.f32 %v896, %v1060
        %v1062 = vpop.f32.mrf.mxu0
        %v1063 = vpop.f32.mrf.mxu0
        %v1064 = vadd.f32 %v896, %v1063
        %v1065 = vpop.f32.mrf.mxu0
        %1066 = vmatprep.mubr.bf16.mxu0 0
        %1067 = vmatmul.mubr.bf16.gmra.mxu0 %v854
        %v1068 = vpop.f32.mrf.mxu0
        %v1069 = vadd.f32 %v896, %v1068
        %v1070 = vpop.f32.mrf.mxu0
        %v1071 = vpop.f32.mrf.mxu0
        %v1072 = vadd.f32 %v896, %v1071
        %v1073 = vpop.f32.mrf.mxu0
        %1074 = vmatprep.mubr.bf16.mxu0 0
        %1075 = vmatmul.mubr.bf16.gmra.mxu0 %v855
        %v1076 = vpop.f32.mrf.mxu0
        %v1077 = vadd.f32 %v896, %v1076
        %v1078 = vpop.f32.mrf.mxu0
        %v1079 = vpop.f32.mrf.mxu0
        %v1080 = vadd.f32 %v896, %v1079
        %v1081 = vpop.f32.mrf.mxu0
        %1082 = vmatprep.mubr.bf16.mxu0 0
        %1083 = vmatmul.mubr.bf16.gmra.mxu0 %v856
        %v1084 = vpop.f32.mrf.mxu0
        %v1085 = vadd.f32 %v896, %v1084
        %v1086 = vpop.f32.mrf.mxu0
        %v1087 = vpop.f32.mrf.mxu0
        %v1088 = vadd.f32 %v896, %v1087
        %v1089 = vpop.f32.mrf.mxu0
        %1090 = vmatprep.mubr.bf16.mxu0 0
        %1091 = vmatmul.mubr.bf16.gmra.mxu0 %v857
        %v1092 = vpop.f32.mrf.mxu0
        %v1093 = vadd.f32 %v896, %v1092
        %v1094 = vpop.f32.mrf.mxu0
        %v1095 = vpop.f32.mrf.mxu0
        %v1096 = vadd.f32 %v896, %v1095
        %v1097 = vpop.f32.mrf.mxu0
        %1098 = vmatprep.mubr.bf16.mxu0 0
        %1099 = vmatmul.mubr.bf16.gmra.mxu0 %v858
        %v1100 = vpop.f32.mrf.mxu0
        %v1101 = vadd.f32 %v896, %v1100
        %v1102 = vpop.f32.mrf.mxu0
        %v1103 = vpop.f32.mrf.mxu0
        %v1104 = vadd.f32 %v896, %v1103
        %v1105 = vpop.f32.mrf.mxu0
        %1106 = vmatprep.mubr.bf16.mxu0 0
        %1107 = vmatmul.mubr.bf16.gmra.mxu0 %v859
        %v1108 = vpop.f32.mrf.mxu0
        %v1109 = vadd.f32 %v896, %v1108
        %v1110 = vpop.f32.mrf.mxu0
        %v1111 = vpop.f32.mrf.mxu0
        %v1112 = vadd.f32 %v896, %v1111
        %v1113 = vpop.f32.mrf.mxu0
        %1114 = vmatprep.mubr.bf16.mxu0 0
        %1115 = vmatmul.mubr.bf16.gmra.mxu0 %v860
        %v1116 = vpop.f32.mrf.mxu0
        %v1117 = vadd.f32 %v896, %v1116
        %v1118 = vpop.f32.mrf.mxu0
        %v1119 = vpop.f32.mrf.mxu0
        %v1120 = vadd.f32 %v896, %v1119
        %v1121 = vpop.f32.mrf.mxu0
        %1122 = vmatprep.mubr.bf16.mxu0 0
        %1123 = vmatmul.mubr.bf16.gmra.mxu0 %v861
        %v1124 = vpop.f32.mrf.mxu0
        %v1125 = vadd.f32 %v896, %v1124
        %v1126 = vpop.f32.mrf.mxu0
        %v1127 = vpop.f32.mrf.mxu0
        %v1128 = vadd.f32 %v896, %v1127
        %v1129 = vpop.f32.mrf.mxu0
        %1130 = vmatprep.mubr.bf16.mxu0 0
        %1131 = vmatmul.mubr.bf16.gmra.mxu0 %v862
        %v1132 = vpop.f32.mrf.mxu0
        %v1133 = vadd.f32 %v896, %v1132
        %v1134 = vpop.f32.mrf.mxu0
        %v1135 = vpop.f32.mrf.mxu0
        %v1136 = vadd.f32 %v896, %v1135
        %v1137 = vpop.f32.mrf.mxu0
        %1138 = vmatprep.mubr.bf16.mxu0 0
        %1139 = vmatmul.mubr.bf16.gmra.mxu0 %v863
        %v1140 = vpop.f32.mrf.mxu0
        %v1141 = vadd.f32 %v896, %v1140
        %v1142 = vpop.f32.mrf.mxu0
        %v1143 = vpop.f32.mrf.mxu0
        %v1144 = vadd.f32 %v896, %v1143
        %v1145 = vpop.f32.mrf.mxu0
        %1146 = vmatprep.mubr.bf16.mxu0 0
        %1147 = vmatmul.mubr.bf16.gmra.mxu0 %v864
        %v1148 = vpop.f32.mrf.mxu0
        %v1149 = vadd.f32 %v896, %v1148
        %v1150 = vpop.f32.mrf.mxu0
        %v1151 = vpop.f32.mrf.mxu0
        %v1152 = vadd.f32 %v896, %v1151
        %v1153 = vpop.f32.mrf.mxu0
        %1154 = vmatprep.mubr.bf16.mxu0 0
        %1155 = vmatmul.mubr.bf16.gmra.mxu0 %v865
        %v1156 = vpop.f32.mrf.mxu0
        %v1157 = vadd.f32 %v896, %v1156
        %v1158 = vpop.f32.mrf.mxu0
        %v1159 = vpop.f32.mrf.mxu0
        %v1160 = vadd.f32 %v896, %v1159
        %v1161 = vpop.f32.mrf.mxu0
        %1162 = vmatprep.mubr.bf16.mxu0 0
        %1163 = vmatmul.mubr.bf16.gmra.mxu0 %v866
        %v1164 = vpop.f32.mrf.mxu0
        %v1165 = vadd.f32 %v896, %v1164
        %v1166 = vpop.f32.mrf.mxu0
        %v1167 = vpop.f32.mrf.mxu0
        %v1168 = vadd.f32 %v896, %v1167
        %v1169 = vpop.f32.mrf.mxu0
        %1170 = vmatprep.mubr.bf16.mxu0 0
        %1171 = vmatmul.mubr.bf16.gmra.mxu0 %v867
        %v1172 = vpop.f32.mrf.mxu0
        %v1173 = vadd.f32 %v896, %v1172
        %v1174 = vpop.f32.mrf.mxu0
        %v1175 = vpop.f32.mrf.mxu0
        %v1176 = vadd.f32 %v896, %v1175
        %v1177 = vpop.f32.mrf.mxu0
        %1178 = vmatprep.mubr.bf16.mxu0 0
        %1179 = vmatmul.mubr.bf16.gmra.mxu0 %v868
        %v1180 = vpop.f32.mrf.mxu0
        %v1181 = vadd.f32 %v896, %v1180
        %v1182 = vpop.f32.mrf.mxu0
        %v1183 = vpop.f32.mrf.mxu0
        %v1184 = vadd.f32 %v896, %v1183
        %v1185 = vpop.f32.mrf.mxu0
        %1186 = vmatprep.mubr.bf16.mxu0 0
        %1187 = vmatmul.mubr.bf16.gmra.mxu0 %v869
        %v1188 = vpop.f32.mrf.mxu0
        %v1189 = vadd.f32 %v896, %v1188
        %v1190 = vpop.f32.mrf.mxu0
        %v1191 = vpop.f32.mrf.mxu0
        %v1192 = vadd.f32 %v896, %v1191
        %v1193 = vpop.f32.mrf.mxu0
        %1194 = vmatprep.mubr.bf16.mxu0 0
        %1195 = vmatmul.mubr.bf16.gmra.mxu0 %v870
        %v1196 = vpop.f32.mrf.mxu0
        %v1197 = vadd.f32 %v896, %v1196
        %v1198 = vpop.f32.mrf.mxu0
        %v1199 = vpop.f32.mrf.mxu0
        %v1200 = vadd.f32 %v896, %v1199
        %v1201 = vpop.f32.mrf.mxu0
        %1202 = vmatprep.mubr.bf16.mxu0 0
        %1203 = vmatmul.mubr.bf16.gmra.mxu0 %v871
        %v1204 = vpop.f32.mrf.mxu0
        %v1205 = vadd.f32 %v896, %v1204
        %v1206 = vpop.f32.mrf.mxu0
        %v1207 = vpop.f32.mrf.mxu0
        %v1208 = vadd.f32 %v896, %v1207
        %v1209 = vpop.f32.mrf.mxu0
        %1210 = vmatprep.mubr.bf16.mxu0 0
        %1211 = vmatmul.mubr.bf16.gmra.mxu0 %v872
        %v1212 = vpop.f32.mrf.mxu0
        %v1213 = vadd.f32 %v896, %v1212
        %v1214 = vpop.f32.mrf.mxu0
        %v1215 = vpop.f32.mrf.mxu0
        %v1216 = vadd.f32 %v896, %v1215
        %v1217 = vpop.f32.mrf.mxu0
        %1218 = vmatprep.mubr.bf16.mxu0 0
        %1219 = vmatmul.mubr.bf16.gmra.mxu0 %v873
        %v1220 = vpop.f32.mrf.mxu0
        %v1221 = vadd.f32 %v896, %v1220
        %v1222 = vpop.f32.mrf.mxu0
        %v1223 = vpop.f32.mrf.mxu0
        %v1224 = vadd.f32 %v896, %v1223
        %v1225 = vpop.f32.mrf.mxu0
        %1226 = vmatprep.mubr.bf16.mxu0 0
        %1227 = vmatmul.mubr.bf16.gmra.mxu0 %v874
        %v1228 = vpop.f32.mrf.mxu0
        %v1229 = vadd.f32 %v896, %v1228
        %v1230 = vpop.f32.mrf.mxu0
        %v1231 = vpop.f32.mrf.mxu0
        %v1232 = vadd.f32 %v896, %v1231
        %v1233 = vpop.f32.mrf.mxu0
        %1234 = vdwg.mxu0
        %v1235 = vmax.f32 %v981, 0.0
        %v1236 = vmax.f32 %v984, 0.0
        %v1237 = vmax.f32 %v989, 0.0
        %v1238 = vmax.f32 %v992, 0.0
        %v1239 = vmax.f32 %v997, 0.0
        %v1240 = vmax.f32 %v1000, 0.0
        %v1241 = vmax.f32 %v1005, 0.0
        %v1242 = vmax.f32 %v1008, 0.0
        %v1243 = vmax.f32 %v1013, 0.0
        %v1244 = vmax.f32 %v1016, 0.0
        %v1245 = vmax.f32 %v1021, 0.0
        %v1246 = vmax.f32 %v1024, 0.0
        %v1247 = vmax.f32 %v1029, 0.0
        %v1248 = vmax.f32 %v1032, 0.0
        %v1249 = vmax.f32 %v1037, 0.0
        %v1250 = vmax.f32 %v1040, 0.0
        %v1251 = vmax.f32 %v1045, 0.0
        %v1252 = vmax.f32 %v1048, 0.0
        %v1253 = vmax.f32 %v1053, 0.0
        %v1254 = vmax.f32 %v1056, 0.0
        %v1255 = vmax.f32 %v1061, 0.0
        %v1256 = vmax.f32 %v1064, 0.0
        %v1257 = vmax.f32 %v1069, 0.0
        %v1258 = vmax.f32 %v1072, 0.0
        %v1259 = vmax.f32 %v1077, 0.0
        %v1260 = vmax.f32 %v1080, 0.0
        %v1261 = vmax.f32 %v1085, 0.0
        %v1262 = vmax.f32 %v1088, 0.0
        %v1263 = vmax.f32 %v1093, 0.0
        %v1264 = vmax.f32 %v1096, 0.0
        %v1265 = vmax.f32 %v1101, 0.0
        %v1266 = vmax.f32 %v1104, 0.0
        %v1267 = vmax.f32 %v1109, 0.0
        %v1268 = vmax.f32 %v1112, 0.0
        %v1269 = vmax.f32 %v1117, 0.0
        %v1270 = vmax.f32 %v1120, 0.0
        %v1271 = vmax.f32 %v1125, 0.0
        %v1272 = vmax.f32 %v1128, 0.0
        %v1273 = vmax.f32 %v1133, 0.0
        %v1274 = vmax.f32 %v1136, 0.0
        %v1275 = vmax.f32 %v1141, 0.0
        %v1276 = vmax.f32 %v1144, 0.0
        %v1277 = vmax.f32 %v1149, 0.0
        %v1278 = vmax.f32 %v1152, 0.0
        %v1279 = vmax.f32 %v1157, 0.0
        %v1280 = vmax.f32 %v1160, 0.0
        %v1281 = vmax.f32 %v1165, 0.0
        %v1282 = vmax.f32 %v1168, 0.0
        %v1283 = vmax.f32 %v1173, 0.0
        %v1284 = vmax.f32 %v1176, 0.0
        %v1285 = vmax.f32 %v1181, 0.0
        %v1286 = vmax.f32 %v1184, 0.0
        %v1287 = vmax.f32 %v1189, 0.0
        %v1288 = vmax.f32 %v1192, 0.0
        %v1289 = vmax.f32 %v1197, 0.0
        %v1290 = vmax.f32 %v1200, 0.0
        %v1291 = vmax.f32 %v1205, 0.0
        %v1292 = vmax.f32 %v1208, 0.0
        %v1293 = vmax.f32 %v1213, 0.0
        %v1294 = vmax.f32 %v1216, 0.0
        %v1295 = vmax.f32 %v1221, 0.0
        %v1296 = vmax.f32 %v1224, 0.0
        %v1297 = vmax.f32 %v1229, 0.0
        %v1298 = vmax.f32 %v1232, 0.0
        %v1299 = vld [vmem:[%s5] sm:$0xf]
        %v1300 = vpack.c.bf16 %v1236, %v1235
        %v1301 = vpack.c.bf16 %v1238, %v1237
        %v1302 = vpack.c.bf16 %v1240, %v1239
        %v1303 = vpack.c.bf16 %v1242, %v1241
        %v1304 = vpack.c.bf16 %v1244, %v1243
        %v1305 = vpack.c.bf16 %v1246, %v1245
        %v1306 = vpack.c.bf16 %v1248, %v1247
        %v1307 = vpack.c.bf16 %v1250, %v1249
        %v1308 = vpack.c.bf16 %v1252, %v1251
        %v1309 = vpack.c.bf16 %v1254, %v1253
        %v1310 = vpack.c.bf16 %v1256, %v1255
        %v1311 = vpack.c.bf16 %v1258, %v1257
        %v1312 = vpack.c.bf16 %v1260, %v1259
        %v1313 = vpack.c.bf16 %v1262, %v1261
        %v1314 = vpack.c.bf16 %v1264, %v1263
        %v1315 = vpack.c.bf16 %v1266, %v1265
        %v1316 = vpack.c.bf16 %v1268, %v1267
        %v1317 = vpack.c.bf16 %v1270, %v1269
        %v1318 = vpack.c.bf16 %v1272, %v1271
        %v1319 = vpack.c.bf16 %v1274, %v1273
        %v1320 = vpack.c.bf16 %v1276, %v1275
        %v1321 = vpack.c.bf16 %v1278, %v1277
        %v1322 = vpack.c.bf16 %v1280, %v1279
        %v1323 = vpack.c.bf16 %v1282, %v1281
        %v1324 = vpack.c.bf16 %v1284, %v1283
        %v1325 = vpack.c.bf16 %v1286, %v1285
        %v1326 = vpack.c.bf16 %v1288, %v1287
        %v1327 = vpack.c.bf16 %v1290, %v1289
        %v1328 = vpack.c.bf16 %v1292, %v1291
        %v1329 = vpack.c.bf16 %v1294, %v1293
        %v1330 = vpack.c.bf16 %v1296, %v1295
        %v1331 = vpack.c.bf16 %v1298, %v1297
        %1332 = vmatprep.subr.bf16.mxu0 0
        %1333 = vmatpush1.bf16.xpose.msra.mxu0 %v1307
        %1334 = vmatprep.subr.bf16.mxu0 0
        %1335 = vmatpush1.bf16.xpose.msra.mxu0 %v1306
        %1336 = vmatprep.subr.bf16.mxu0 0
        %1337 = vmatpush1.bf16.xpose.msra.mxu0 %v1305
        %1338 = vmatprep.subr.bf16.mxu0 0
        %1339 = vmatpush1.bf16.xpose.msra.mxu0 %v1304
        %1340 = vmatprep.subr.bf16.mxu0 0
        %1341 = vmatpush1.bf16.xpose.msra.mxu0 %v1303
        %1342 = vmatprep.subr.bf16.mxu0 0
        %1343 = vmatpush1.bf16.xpose.msra.mxu0 %v1302
        %1344 = vmatprep.subr.bf16.mxu0 0
        %1345 = vmatpush1.bf16.xpose.msra.mxu0 %v1301
        %1346 = vmatprep.subr.bf16.mxu0 0
        %1347 = vmatpush1.bf16.xpose.msra.mxu0 %v1300
        %1348 = vmatprep.subr.bf16.mxu0 0
        %1349 = vmatpush2.bf16.xpose.msra.mxu0 %v1315
        %1350 = vmatprep.subr.bf16.mxu0 0
        %1351 = vmatpush2.bf16.xpose.msra.mxu0 %v1314
        %1352 = vmatprep.subr.bf16.mxu0 0
        %1353 = vmatpush2.bf16.xpose.msra.mxu0 %v1313
        %1354 = vmatprep.subr.bf16.mxu0 0
        %1355 = vmatpush2.bf16.xpose.msra.mxu0 %v1312
        %1356 = vmatprep.subr.bf16.mxu0 0
        %1357 = vmatpush2.bf16.xpose.msra.mxu0 %v1311
        %1358 = vmatprep.subr.bf16.mxu0 0
        %1359 = vmatpush2.bf16.xpose.msra.mxu0 %v1310
        %1360 = vmatprep.subr.bf16.mxu0 0
        %1361 = vmatpush2.bf16.xpose.msra.mxu0 %v1309
        %1362 = vmatprep.subr.bf16.mxu0 0
        %1363 = vmatpush2.bf16.xpose.msra.mxu0 %v1308
        %1364 = vmatprep.mubr.bf16.mxu0 0
        %1365 = vmatmul.mubr.bf16.gmra.mxu0 %v1299
        %v1366 = vpop.f32.mrf.mxu0
        %v1367 = vadd.f32 0.0, %v1366
        %v1368 = vpop.f32.mrf.mxu0
        %v1369 = vadd.f32 0.0, %v1368
        %v1370 = vpop.f32.mrf.mxu0
        %v1371 = vpop.f32.mrf.mxu0
        %1372 = vdwg.mxu0
        %1373 = vmatprep.subr.bf16.mxu0 0
        %1374 = vmatpush1.bf16.xpose.msra.mxu0 %v1323
        %1375 = vmatprep.subr.bf16.mxu0 0
        %1376 = vmatpush1.bf16.xpose.msra.mxu0 %v1322
        %1377 = vmatprep.subr.bf16.mxu0 0
        %1378 = vmatpush1.bf16.xpose.msra.mxu0 %v1321
        %1379 = vmatprep.subr.bf16.mxu0 0
        %1380 = vmatpush1.bf16.xpose.msra.mxu0 %v1320
        %1381 = vmatprep.subr.bf16.mxu0 0
        %1382 = vmatpush1.bf16.xpose.msra.mxu0 %v1319
        %1383 = vmatprep.subr.bf16.mxu0 0
        %1384 = vmatpush1.bf16.xpose.msra.mxu0 %v1318
        %1385 = vmatprep.subr.bf16.mxu0 0
        %1386 = vmatpush1.bf16.xpose.msra.mxu0 %v1317
        %1387 = vmatprep.subr.bf16.mxu0 0
        %1388 = vmatpush1.bf16.xpose.msra.mxu0 %v1316
        %1389 = vmatprep.subr.bf16.mxu0 0
        %1390 = vmatpush2.bf16.xpose.msra.mxu0 %v1331
        %1391 = vmatprep.subr.bf16.mxu0 0
        %1392 = vmatpush2.bf16.xpose.msra.mxu0 %v1330
        %1393 = vmatprep.subr.bf16.mxu0 0
        %1394 = vmatpush2.bf16.xpose.msra.mxu0 %v1329
        %1395 = vmatprep.subr.bf16.mxu0 0
        %1396 = vmatpush2.bf16.xpose.msra.mxu0 %v1328
        %1397 = vmatprep.subr.bf16.mxu0 0
        %1398 = vmatpush2.bf16.xpose.msra.mxu0 %v1327
        %1399 = vmatprep.subr.bf16.mxu0 0
        %1400 = vmatpush2.bf16.xpose.msra.mxu0 %v1326
        %1401 = vmatprep.subr.bf16.mxu0 0
        %1402 = vmatpush2.bf16.xpose.msra.mxu0 %v1325
        %1403 = vmatprep.subr.bf16.mxu0 0
        %1404 = vmatpush2.bf16.xpose.msra.mxu0 %v1324
        %1405 = vmatprep.mubr.bf16.mxu0 0
        %1406 = vmatmul.mubr.bf16.gmra.mxu0 %v1299
        %v1407 = vpop.f32.mrf.mxu0
        %v1408 = vadd.f32 0.0, %v1407
        %v1409 = vpop.f32.mrf.mxu0
        %v1410 = vadd.f32 0.0, %v1409
        %v1411 = vpop.f32.mrf.mxu0
        %v1412 = vpop.f32.mrf.mxu0
        %1413 = vdwg.mxu0
        %s1414 = sld [smem:[#allocation2]]
        %v1415 = vstv %s1414
        %v1416 = vadd.f32 %v1367, %v1415
        %v1417 = vadd.f32 %v1369, %v1415
        %v1418 = vadd.f32 %v1408, %v1415
        %v1419 = vadd.f32 %v1410, %v1415
        %v1424 = vcombine.low %v1416, %v1417
        %v1425 = vcombine.low %v1418, %v1419
        %v1427 = vunpack.c.l.s4 1966171168
        %v1428 = vunpack.c.0.s8 %v1427
        %v1429 = vlaneseq
        %v1430 = vshrl.u32 %v1429, 7
        %v1431 = vsub.s32 %v1428, %v1430
        %v1432 = vrot.slane %v1424, %v1431
        %v1434 = vunpack.c.l.s4 1966171168
        %v1435 = vunpack.c.0.s8 %v1434
        %v1436 = vlaneseq
        %v1437 = vshrl.u32 %v1436, 7
        %v1438 = vsub.s32 %v1435, %v1437
        %v1439 = vrot.slane %v1425, %v1438
        %v1440 = vcombine.low %v1432, %v1439
        %v1442 = vunpack.c.l.s4 1966171168
        %v1443 = vunpack.c.0.s8 %v1442
        %v1444 = vlaneseq
        %v1445 = vshrl.u32 %v1444, 7
        %v1446 = vsub.s32 %v1443, %v1445
        %v1447 = vrot.slane %v1440, %v1446
        %v1449 = vlaneseq
        %vm1450 = vcmp.ge.s32.totalorder %v1449, 0
        %vm1451 = vcmp.lt.s32.totalorder %v1449, 512
        %vm1452 = vmand %vm1450, %vm1451
        %1453 = vst.msk [vmem:[%s273] sm:$0xf] %vm1452, %v1447
        %s1454 = sand.u32 %s182, 1
        %s1455 = scalar_lea.sflag [#allocation4], %s1454
        %s1456 = sand.u32 %s182, 1
        %s1457 = smul.addr %s1456, 4
        %s1458 = scalar_lea.vmem [#allocation3], %s1457
        // Predicated region
        $region49: #{tpu_custom_call.1} parent=47 // pred_check
          %p1459 = pneg %p192
        $region50: #{tpu_custom_call.1} parent=47 // pred_check_branch
          %1461 = sbr.rel (%p1459) target = $region52
        $region51: #{tpu_custom_call.1} parent=47 // pred_region
          %s1462 = smul.u32 4, %s22
          %s1464 = ssub.s32 64, 64
          %1465 = vsyncadd %s1455, %s1464
          %s1466 = smul.addr %s1462, 16
          %s1467 = scalar_lea.hbm %s7, %s1466
          %s1469 = sshll.u32 %s1458, 4
          %s1470 = int_to_ptr.vmem [resolvable:$true] %s1469
          %1472 = dma.vmem_to_hbm [thread:$0]  %s1470, 64, %s1467, %s1455
        $region52: #{tpu_custom_call.1} parent=47 // pred_fallthru
          _
      $region48: #{tpu_custom_call.1} parent=5 // pred_fallthru
        _
      %p1473 = scmp.le.s32.totalorder 2, %s17
      // Predicated region
      $region53: #{tpu_custom_call.1} parent=5 // pred_check
        %p1474 = pneg %p1473
      $region54: #{tpu_custom_call.1} parent=5 // pred_check_branch
        %1476 = sbr.rel (%p1474) target = $region56
      $region55: #{tpu_custom_call.1} parent=5 // pred_region
        %s1477 = ssub.s32 %s17, 2
        // Predicated region
        $region57: #{tpu_custom_call.1} parent=55 // pred_check
          %p1478 = pneg %p198
        $region58: #{tpu_custom_call.1} parent=55 // pred_check_branch
          %1480 = sbr.rel (%p1478) target = $region60
        $region59: #{tpu_custom_call.1} parent=55 // pred_region
          %s1481 = sand.u32 %s183, 1
          %s1482 = scalar_lea.sflag [#allocation4], %s1481
          %s1483 = sand.u32 %s183, 1
          %s1484 = smul.addr %s1483, 4
          %s1485 = scalar_lea.vmem [#allocation3], %s1484
          %1486 = dma.done %s1482, 64
        $region60: #{tpu_custom_call.1} parent=55 // pred_fallthru
          _
      $region56: #{tpu_custom_call.1} parent=5 // pred_fallthru
        _
    $region6: #{tpu_custom_call.1} parent=1 // loop_footer
      %s21 = sadd.s32 1, %s17
    $region7: #{tpu_custom_call.1} parent=1 // loop_footer_branch
      %16 = sbr.rel target = $region3
    $region8: #{tpu_custom_call.1} parent=1 // loop_exit
      _
    %1487 = vsyncpa [#allocation4], 1
    %s1488 = scalar_lea.sflag [#allocation4], 1
    %1489 = vsyncpa %s1488, 1

</llo_original>
